<compile_context>
chip_gen: v7x
topology: tpu7x:2x2x1
jax: 0.10.0
libtpu: 0.0.40
codegen_flags: <defaults>
</compile_context>

<pallas_src>
import math
import functools

import jax
import jax.numpy as jnp
from jax import lax
from jax.experimental import pallas as pl
from jax.experimental.pallas import tpu as pltpu


# ----------------------------------------------------------------------------
# Fused MHA kernel: one batch *tile* per grid step, all heads resident.
# ----------------------------------------------------------------------------
def _mha_kernel(q_ref, k_ref, v_ref, vl_ref,
                wq_ref, wk_ref, wv_ref, wo_ref,
                o_ref, ctx_ref, *,
                num_heads, head_dim, bt, tq, tk, scale, matmul_dtype):
    f32 = jnp.float32
    d = num_heads * head_dim

    # --- fused Q/K/V projections over the whole batch tile (one MXU dot each) ---
    q = jnp.dot(q_ref[...].astype(matmul_dtype), wq_ref[...].astype(matmul_dtype),
                preferred_element_type=f32)                      # (bt*Tq, D)
    k = jnp.dot(k_ref[...].astype(matmul_dtype), wk_ref[...].astype(matmul_dtype),
                preferred_element_type=f32)                      # (bt*Tk, D)
    v = jnp.dot(v_ref[...].astype(matmul_dtype), wv_ref[...].astype(matmul_dtype),
                preferred_element_type=f32)                      # (bt*Tk, D)

    # 1/sqrt(head_dim) applied once to Q, not to every score matrix.
    q = q * f32(scale)

    # Split the leading dim back into (batch_tile, seq): free sublane-major reshape.
    q3 = q.reshape(bt, tq, d)
    k3 = k.reshape(bt, tk, d)
    v3 = v.reshape(bt, tk, d)

    # d2l.masked_softmax semantics: key positions >= valid_len get a -1e6 score.
    vl = vl_ref[...].reshape(bt, tq, 1)                          # int32 per-query lens
    col = lax.broadcasted_iota(jnp.int32, (bt, tq, tk), 2)
    keep = col < vl                                              # (bt, Tq, Tk)

    # TODO(synk): for larger num_heads / Tk, switch this static unroll to
    # lax.fori_loop(..., unroll=True) to bound vreg live ranges.
    for h in range(num_heads):
        sl = slice(h * head_dim, (h + 1) * head_dim)
        qh = q3[:, :, sl].astype(matmul_dtype)                   # static lane slices
        kh = k3[:, :, sl].astype(matmul_dtype)
        vh = v3[:, :, sl].astype(matmul_dtype)

        # Batched scores; transpose folded into the contraction (no k.T via XLU).
        s = lax.dot_general(qh, kh, (((2,), (2,)), ((0,), (0,))),
                            preferred_element_type=f32)          # (bt, Tq, Tk)
        s = jnp.where(keep, s, f32(-1e6))
        s = s - jnp.max(s, axis=-1, keepdims=True)
        e = jnp.exp(s)
        denom = jnp.sum(e, axis=-1, keepdims=True)
        # EUP approximate reciprocal + one Newton step: ~f32-exact, divide off VALU.
        r = pl.reciprocal(denom, approx=True)
        r = r * (2.0 - denom * r)
        attn = (e * r).astype(matmul_dtype)                      # dropout(p=0) == id

        ctx_h = lax.dot_general(attn, vh, (((2,), (1,)), ((0,), (0,))),
                                preferred_element_type=f32)      # (bt, Tq, hd)
        # Write this head's context into its lane slice of the VMEM scratch
        # (replaces jnp.concatenate -> no cross-lane relayout of head partials).
        ctx_ref[:, sl] = ctx_h.reshape(bt * tq, head_dim)

    # Output projection; (bt*Tq, D) store is sublane-dense (>= 8 rows per store).
    out = jnp.dot(ctx_ref[...].astype(matmul_dtype), wo_ref[...].astype(matmul_dtype),
                  preferred_element_type=f32)
    o_ref[...] = out.astype(o_ref.dtype)


def _pick_batch_tile(b, tq):
    # Target ~256 M-rows per grid step (fills the 256-row MXU on v6e/v7x and
    # amortizes the ~0.35us per-step overhead), but keep >= 2 parallel grid
    # steps whenever B >= 2 so both v7x TensorCores get work.
    bt = max(1, min(b, max(1, 256 // max(tq, 1))))
    if b >= 2:
        bt = max(1, min(bt, b // 2))
    while b % bt:
        bt -= 1
    return bt


def pallas_multi_head_attention(queries, keys, values, valid_lens,
                                w_q, w_k, w_v, w_o, num_heads,
                                matmul_dtype=jnp.bfloat16):
    """queries: (B,Tq,Dq), keys/values: (B,Tk,Dk/Dv), weights: (Din, D)."""
    b, tq, dq = queries.shape
    _, tk, dk = keys.shape
    _, _, dv = values.shape
    d = w_q.shape[-1]
    assert d % num_heads == 0
    head_dim = d // num_heads

    bt = _pick_batch_tile(b, tq)
    nb = b // bt

    # Normalize valid_lens to a dense (B*Tq, 1) int32 tensor (handles None,
    # per-example (B,) and per-query (B,Tq) forms; the torch.repeat_interleave
    # across heads is eliminated entirely).
    if valid_lens is None:
        vl = jnp.full((b, tq), tk, dtype=jnp.int32)
    elif valid_lens.ndim == 1:
        vl = jnp.broadcast_to(valid_lens.astype(jnp.int32)[:, None], (b, tq))
    else:
        vl = valid_lens.astype(jnp.int32)
    vl = vl.reshape(b * tq, 1)

    # 2-D slabs: no size-1 leading block dims; reshapes here are free bitcasts.
    q_flat = queries.reshape(b * tq, dq)
    k_flat = keys.reshape(b * tk, dk)
    v_flat = values.reshape(b * tk, dv)

    kernel = functools.partial(
        _mha_kernel, num_heads=num_heads, head_dim=head_dim,
        bt=bt, tq=tq, tk=tk, scale=1.0 / math.sqrt(head_dim),
        matmul_dtype=matmul_dtype)

    out_flat = pl.pallas_call(
        kernel,
        out_shape=jax.ShapeDtypeStruct((b * tq, d), queries.dtype),
        grid=(nb,),
        in_specs=[
            pl.BlockSpec((bt * tq, dq), lambda i: (i, 0)),   # queries (batch tile)
            pl.BlockSpec((bt * tk, dk), lambda i: (i, 0)),   # keys
            pl.BlockSpec((bt * tk, dv), lambda i: (i, 0)),   # values
            pl.BlockSpec((bt * tq, 1), lambda i: (i, 0)),    # valid_lens
            pl.BlockSpec((dq, d), lambda i: (0, 0)),         # W_q (resident)
            pl.BlockSpec((dk, d), lambda i: (0, 0)),         # W_k (resident)
            pl.BlockSpec((dv, d), lambda i: (0, 0)),         # W_v (resident)
            pl.BlockSpec((d, d), lambda i: (0, 0)),          # W_o (resident)
        ],
        out_specs=pl.BlockSpec((bt * tq, d), lambda i: (i, 0)),
        scratch_shapes=[pltpu.VMEM((bt * tq, d), jnp.float32)],   # head-merge scratch
        compiler_params=pltpu.CompilerParams(
            dimension_semantics=("parallel",),
            # Small footprint at these shapes; sized well under v7x's 64 MiB VMEM.
            vmem_limit_bytes=32 * 1024 * 1024,
        ),
    )(q_flat, k_flat, v_flat, vl, w_q, w_k, w_v, w_o)

    return out_flat.reshape(b, tq, d)


# ----------------------------------------------------------------------------
# Module wrapper (mirrors the PyTorch MultiHeadAttention, bias=False, eval mode)
# ----------------------------------------------------------------------------
class MultiHeadAttentionPallas:
    def __init__(self, key_size, query_size, value_size, num_hiddens, num_heads, key):
        self.num_heads = num_heads
        k1, k2, k3, k4 = jax.random.split(key, 4)

        def init_w(k, fan_in, fan_out):
            # PyTorch nn.Linear default: U(-1/sqrt(fan_in), 1/sqrt(fan_in)),
            # stored as (fan_in, fan_out) so the forward is x @ W.
            bound = 1.0 / math.sqrt(fan_in)
            return jax.random.uniform(
                k, (fan_in, fan_out), jnp.float32, minval=-bound, maxval=bound)

        self.w_q = init_w(k1, query_size, num_hiddens)
        self.w_k = init_w(k2, key_size, num_hiddens)
        self.w_v = init_w(k3, value_size, num_hiddens)
        self.w_o = init_w(k4, num_hiddens, num_hiddens)

    def __call__(self, queries, keys, values, valid_lens, matmul_dtype=jnp.bfloat16):
        return pallas_multi_head_attention(
            queries, keys, values, valid_lens,
            self.w_q, self.w_k, self.w_v, self.w_o, self.num_heads,
            matmul_dtype=matmul_dtype)


# ----------------------------------------------------------------------------
# Pure-JAX reference (follows the PyTorch module exactly) for verification
# ----------------------------------------------------------------------------
def transpose_qkv(x, num_heads):
    b, t, h = x.shape
    x = x.reshape(b, t, num_heads, h // num_heads)
    x = jnp.transpose(x, (0, 2, 1, 3))
    return x.reshape(b * num_heads, t, h // num_heads)


def transpose_output(x, num_heads):
    bh, t, hd = x.shape
    x = x.reshape(-1, num_heads, t, hd)
    x = jnp.transpose(x, (0, 2, 1, 3))
    return x.reshape(x.shape[0], t, num_heads * hd)


def reference_forward(mha, queries, keys, values, valid_lens):
    q = transpose_qkv(queries @ mha.w_q, mha.num_heads)
    k = transpose_qkv(keys @ mha.w_k, mha.num_heads)
    v = transpose_qkv(values @ mha.w_v, mha.num_heads)
    hd = q.shape[-1]
    scores = jnp.einsum("bqd,bkd->bqk", q, k) / math.sqrt(hd)    # (BH, Tq, Tk)
    if valid_lens is not None:
        vl = jnp.repeat(valid_lens.astype(jnp.int32), mha.num_heads, axis=0)
        if vl.ndim == 1:
            vl = vl[:, None]                                     # (BH, 1)
        col = jnp.arange(scores.shape[-1])
        mask = col[None, None, :] < vl[:, :, None]               # (BH, Tq, Tk)
        scores = jnp.where(mask, scores, -1e6)
    attn = jax.nn.softmax(scores, axis=-1)
    out = jnp.einsum("bqk,bkd->bqd", attn, v)
    out_concat = transpose_output(out, mha.num_heads)
    return out_concat @ mha.w_o


# ----------------------------------------------------------------------------
if __name__ == "__main__":
    batch = 2
    seq_q = 8
    seq_kv = 8
    num_hiddens = 32
    num_heads = 4
    query_size = key_size = value_size = 32

    root = jax.random.PRNGKey(0)
    kq, kk, kv, kw = jax.random.split(root, 4)

    queries = jax.random.normal(kq, (batch, seq_q, query_size), jnp.float32)
    keys = jax.random.normal(kk, (batch, seq_kv, key_size), jnp.float32)
    values = jax.random.normal(kv, (batch, seq_kv, value_size), jnp.float32)

    mha = MultiHeadAttentionPallas(
        key_size, query_size, value_size, num_hiddens, num_heads, key=kw)

    # Case 1: per-example valid_lens (B,), bf16 MXU operands (default fast path).
    valid_lens = jnp.array([3, 6], dtype=jnp.int32)
    out = jax.block_until_ready(mha(queries, keys, values, valid_lens))
    assert out.shape == (batch, seq_q, num_hiddens)
    ref = jax.block_until_ready(
        reference_forward(mha, queries, keys, values, valid_lens))
    assert jnp.allclose(out, ref, atol=3e-2, rtol=3e-2), (
        f"mismatch (1D lens, bf16): max abs err {jnp.max(jnp.abs(out - ref))}")

    # Case 2: per-query valid_lens (B, Tq), bf16 MXU operands.
    valid_lens_2d = jnp.array(
        [[1, 2, 3, 4, 5, 6, 7, 8],
         [8, 7, 6, 5, 4, 3, 2, 1]], dtype=jnp.int32)
    out2 = jax.block_until_ready(mha(queries, keys, values, valid_lens_2d))
    ref2 = jax.block_until_ready(
        reference_forward(mha, queries, keys, values, valid_lens_2d))
    assert jnp.allclose(out2, ref2, atol=3e-2, rtol=3e-2), (
        f"mismatch (2D lens, bf16): max abs err {jnp.max(jnp.abs(out2 - ref2))}")

    # Case 3: f32 MXU operands -> tight numerical check of the kernel structure.
    out3 = jax.block_until_ready(
        mha(queries, keys, values, valid_lens, matmul_dtype=jnp.float32))
    assert jnp.allclose(out3, ref, atol=1e-3, rtol=1e-3), (
        f"mismatch (1D lens, f32): max abs err {jnp.max(jnp.abs(out3 - ref))}")

    print("KERNEL_OK")
</pallas_src>

<mosaic_0001>
module attributes {stable_mosaic.version = 11 : i64} {
  func.func @_mha_kernel(%arg0: i32, %arg1: memref<8x32xf32, #tpu.memory_space<vmem>>, %arg2: memref<8x32xf32, #tpu.memory_space<vmem>>, %arg3: memref<8x32xf32, #tpu.memory_space<vmem>>, %arg4: memref<8x1xi32, #tpu.memory_space<vmem>>, %arg5: memref<32x32xf32, #tpu.memory_space<vmem>>, %arg6: memref<32x32xf32, #tpu.memory_space<vmem>>, %arg7: memref<32x32xf32, #tpu.memory_space<vmem>>, %arg8: memref<32x32xf32, #tpu.memory_space<vmem>>, %arg9: memref<8x32xf32, #tpu.memory_space<vmem>>, %arg10: memref<8x32xf32, #tpu.memory_space<vmem>>) attributes {dimension_semantics = [#tpu.dimension_semantics<parallel>], iteration_bounds = array<i64: 2>, scalar_prefetch = 0 : i64, scratch_operands = 1 : i64, tpu.core_type = #tpu.core_type<tc>, window_params = [{transform_indices = @transform_0, window_bounds = array<i64: 8, 32>}, {transform_indices = @transform_1, window_bounds = array<i64: 8, 32>}, {transform_indices = @transform_2, window_bounds = array<i64: 8, 32>}, {transform_indices = @transform_3, window_bounds = array<i64: 8, 1>}, {pipeline_mode = #tpu.pipeline_mode<synchronous>, transform_indices = @transform_4, window_bounds = array<i64: 32, 32>}, {pipeline_mode = #tpu.pipeline_mode<synchronous>, transform_indices = @transform_5, window_bounds = array<i64: 32, 32>}, {pipeline_mode = #tpu.pipeline_mode<synchronous>, transform_indices = @transform_6, window_bounds = array<i64: 32, 32>}, {pipeline_mode = #tpu.pipeline_mode<synchronous>, transform_indices = @transform_7, window_bounds = array<i64: 32, 32>}, {transform_indices = @transform_8, window_bounds = array<i64: 8, 32>}]} {
    %c0 = arith.constant 0 : index
    %c0_0 = arith.constant 0 : index
    %0 = vector.load %arg1[%c0, %c0_0] : memref<8x32xf32, #tpu.memory_space<vmem>>, vector<8x32xf32>
    %1 = arith.truncf %0 : vector<8x32xf32> to vector<8x32xbf16>
    %c0_1 = arith.constant 0 : index
    %c0_2 = arith.constant 0 : index
    %2 = vector.load %arg5[%c0_1, %c0_2] : memref<32x32xf32, #tpu.memory_space<vmem>>, vector<32x32xf32>
    %3 = arith.truncf %2 : vector<32x32xf32> to vector<32x32xbf16>
    %cst = arith.constant dense<0.000000e+00> : vector<8x32xf32>
    %4 = tpu.matmul %1, %3, %cst {dimension_numbers = #tpu.dot_dimension_numbers<[1], [0], [0], [1], [0, 0, 1, 1], [], []>} : vector<8x32xbf16>, vector<32x32xbf16>, vector<8x32xf32> -> vector<8x32xf32>
    %c0_3 = arith.constant 0 : index
    %c0_4 = arith.constant 0 : index
    %5 = vector.load %arg2[%c0_3, %c0_4] : memref<8x32xf32, #tpu.memory_space<vmem>>, vector<8x32xf32>
    %6 = arith.truncf %5 : vector<8x32xf32> to vector<8x32xbf16>
    %c0_5 = arith.constant 0 : index
    %c0_6 = arith.constant 0 : index
    %7 = vector.load %arg6[%c0_5, %c0_6] : memref<32x32xf32, #tpu.memory_space<vmem>>, vector<32x32xf32>
    %8 = arith.truncf %7 : vector<32x32xf32> to vector<32x32xbf16>
    %cst_7 = arith.constant dense<0.000000e+00> : vector<8x32xf32>
    %9 = tpu.matmul %6, %8, %cst_7 {dimension_numbers = #tpu.dot_dimension_numbers<[1], [0], [0], [1], [0, 0, 1, 1], [], []>} : vector<8x32xbf16>, vector<32x32xbf16>, vector<8x32xf32> -> vector<8x32xf32>
    %c0_8 = arith.constant 0 : index
    %c0_9 = arith.constant 0 : index
    %10 = vector.load %arg3[%c0_8, %c0_9] : memref<8x32xf32, #tpu.memory_space<vmem>>, vector<8x32xf32>
    %11 = arith.truncf %10 : vector<8x32xf32> to vector<8x32xbf16>
    %c0_10 = arith.constant 0 : index
    %c0_11 = arith.constant 0 : index
    %12 = vector.load %arg7[%c0_10, %c0_11] : memref<32x32xf32, #tpu.memory_space<vmem>>, vector<32x32xf32>
    %13 = arith.truncf %12 : vector<32x32xf32> to vector<32x32xbf16>
    %cst_12 = arith.constant dense<0.000000e+00> : vector<8x32xf32>
    %14 = tpu.matmul %11, %13, %cst_12 {dimension_numbers = #tpu.dot_dimension_numbers<[1], [0], [0], [1], [0, 0, 1, 1], [], []>} : vector<8x32xbf16>, vector<32x32xbf16>, vector<8x32xf32> -> vector<8x32xf32>
    %cst_13 = arith.constant 0.353553385 : f32
    %15 = vector.broadcast %cst_13 : f32 to vector<8x32xf32>
    %16 = arith.mulf %4, %15 : vector<8x32xf32>
    %17 = vector.shape_cast %16 : vector<8x32xf32> to vector<1x8x32xf32>
    %18 = vector.shape_cast %9 : vector<8x32xf32> to vector<1x8x32xf32>
    %19 = vector.shape_cast %14 : vector<8x32xf32> to vector<1x8x32xf32>
    %c0_14 = arith.constant 0 : index
    %c0_15 = arith.constant 0 : index
    %20 = vector.load %arg4[%c0_14, %c0_15] : memref<8x1xi32, #tpu.memory_space<vmem>>, vector<8x1xi32>
    %21 = vector.shape_cast %20 : vector<8x1xi32> to vector<1x8x1xi32>
    %22 = tpu.iota {dimensions = array<i32: 2>} : vector<1x8x8xi32>
    %23 = vector.broadcast %21 : vector<1x8x1xi32> to vector<1x8x8xi32>
    %24 = arith.cmpi slt, %22, %23 : vector<1x8x8xi32>
    %25 = vector.extract_strided_slice %17 {offsets = [0, 0, 0], sizes = [1, 8, 8], strides = [1, 1, 1]} : vector<1x8x32xf32> to vector<1x8x8xf32>
    %26 = arith.truncf %25 : vector<1x8x8xf32> to vector<1x8x8xbf16>
    %27 = vector.extract_strided_slice %18 {offsets = [0, 0, 0], sizes = [1, 8, 8], strides = [1, 1, 1]} : vector<1x8x32xf32> to vector<1x8x8xf32>
    %28 = arith.truncf %27 : vector<1x8x8xf32> to vector<1x8x8xbf16>
    %29 = vector.extract_strided_slice %19 {offsets = [0, 0, 0], sizes = [1, 8, 8], strides = [1, 1, 1]} : vector<1x8x32xf32> to vector<1x8x8xf32>
    %30 = arith.truncf %29 : vector<1x8x8xf32> to vector<1x8x8xbf16>
    %cst_16 = arith.constant dense<0.000000e+00> : vector<1x8x8xf32>
    %31 = tpu.matmul %26, %28, %cst_16 {dimension_numbers = #tpu.dot_dimension_numbers<[2], [2], [1], [1], [0, 0, 0, 1, 1, 1], [0], [0]>} : vector<1x8x8xbf16>, vector<1x8x8xbf16>, vector<1x8x8xf32> -> vector<1x8x8xf32>
    %cst_17 = arith.constant -1.000000e+06 : f32
    %32 = vector.broadcast %cst_17 : f32 to vector<1x8x8xf32>
    %33 = arith.select %24, %31, %32 : vector<1x8x8xi1>, vector<1x8x8xf32>
    %cst_18 = arith.constant dense<0xFF800000> : vector<1x8xf32>
    %34 = vector.multi_reduction <maximumf>, %33, %cst_18 [2] : vector<1x8x8xf32> to vector<1x8xf32>
    %35 = vector.shape_cast %34 : vector<1x8xf32> to vector<1x8x1xf32>
    %36 = vector.broadcast %35 : vector<1x8x1xf32> to vector<1x8x8xf32>
    %37 = arith.subf %33, %36 : vector<1x8x8xf32>
    %38 = math.exp %37 : vector<1x8x8xf32>
    %cst_19 = arith.constant dense<0.000000e+00> : vector<1x8xf32>
    %39 = vector.multi_reduction <add>, %38, %cst_19 [2] : vector<1x8x8xf32> to vector<1x8xf32>
    %40 = vector.shape_cast %39 : vector<1x8xf32> to vector<1x8x1xf32>
    %41 = tpu.reciprocal %40 {approx = true} : vector<1x8x1xf32> -> vector<1x8x1xf32>
    %42 = arith.mulf %40, %41 : vector<1x8x1xf32>
    %cst_20 = arith.constant 2.000000e+00 : f32
    %43 = vector.broadcast %cst_20 : f32 to vector<1x8x1xf32>
    %44 = arith.subf %43, %42 : vector<1x8x1xf32>
    %45 = arith.mulf %41, %44 : vector<1x8x1xf32>
    %46 = vector.broadcast %45 : vector<1x8x1xf32> to vector<1x8x8xf32>
    %47 = arith.mulf %38, %46 : vector<1x8x8xf32>
    %48 = arith.truncf %47 : vector<1x8x8xf32> to vector<1x8x8xbf16>
    %cst_21 = arith.constant dense<0.000000e+00> : vector<1x8x8xf32>
    %49 = tpu.matmul %48, %30, %cst_21 {dimension_numbers = #tpu.dot_dimension_numbers<[2], [1], [1], [2], [0, 0, 0, 1, 1, 2], [0], [0]>} : vector<1x8x8xbf16>, vector<1x8x8xbf16>, vector<1x8x8xf32> -> vector<1x8x8xf32>
    %50 = vector.shape_cast %49 : vector<1x8x8xf32> to vector<8x8xf32>
    %c0_22 = arith.constant 0 : index
    %c0_23 = arith.constant 0 : index
    %51 = vector.load %arg10[%c0_22, %c0_23] : memref<8x32xf32, #tpu.memory_space<vmem>>, vector<8x8xf32>
    tpu.vector_store %arg10[%c0_22, %c0_23], %50 {strides = array<i32>} : memref<8x32xf32, #tpu.memory_space<vmem>>, vector<8x8xf32>,
    %52 = vector.extract_strided_slice %17 {offsets = [0, 0, 8], sizes = [1, 8, 8], strides = [1, 1, 1]} : vector<1x8x32xf32> to vector<1x8x8xf32>
    %53 = arith.truncf %52 : vector<1x8x8xf32> to vector<1x8x8xbf16>
    %54 = vector.extract_strided_slice %18 {offsets = [0, 0, 8], sizes = [1, 8, 8], strides = [1, 1, 1]} : vector<1x8x32xf32> to vector<1x8x8xf32>
    %55 = arith.truncf %54 : vector<1x8x8xf32> to vector<1x8x8xbf16>
    %56 = vector.extract_strided_slice %19 {offsets = [0, 0, 8], sizes = [1, 8, 8], strides = [1, 1, 1]} : vector<1x8x32xf32> to vector<1x8x8xf32>
    %57 = arith.truncf %56 : vector<1x8x8xf32> to vector<1x8x8xbf16>
    %cst_24 = arith.constant dense<0.000000e+00> : vector<1x8x8xf32>
    %58 = tpu.matmul %53, %55, %cst_24 {dimension_numbers = #tpu.dot_dimension_numbers<[2], [2], [1], [1], [0, 0, 0, 1, 1, 1], [0], [0]>} : vector<1x8x8xbf16>, vector<1x8x8xbf16>, vector<1x8x8xf32> -> vector<1x8x8xf32>
    %cst_25 = arith.constant -1.000000e+06 : f32
    %59 = vector.broadcast %cst_25 : f32 to vector<1x8x8xf32>
    %60 = arith.select %24, %58, %59 : vector<1x8x8xi1>, vector<1x8x8xf32>
    %cst_26 = arith.constant dense<0xFF800000> : vector<1x8xf32>
    %61 = vector.multi_reduction <maximumf>, %60, %cst_26 [2] : vector<1x8x8xf32> to vector<1x8xf32>
    %62 = vector.shape_cast %61 : vector<1x8xf32> to vector<1x8x1xf32>
    %63 = vector.broadcast %62 : vector<1x8x1xf32> to vector<1x8x8xf32>
    %64 = arith.subf %60, %63 : vector<1x8x8xf32>
    %65 = math.exp %64 : vector<1x8x8xf32>
    %cst_27 = arith.constant dense<0.000000e+00> : vector<1x8xf32>
    %66 = vector.multi_reduction <add>, %65, %cst_27 [2] : vector<1x8x8xf32> to vector<1x8xf32>
    %67 = vector.shape_cast %66 : vector<1x8xf32> to vector<1x8x1xf32>
    %68 = tpu.reciprocal %67 {approx = true} : vector<1x8x1xf32> -> vector<1x8x1xf32>
    %69 = arith.mulf %67, %68 : vector<1x8x1xf32>
    %cst_28 = arith.constant 2.000000e+00 : f32
    %70 = vector.broadcast %cst_28 : f32 to vector<1x8x1xf32>
    %71 = arith.subf %70, %69 : vector<1x8x1xf32>
    %72 = arith.mulf %68, %71 : vector<1x8x1xf32>
    %73 = vector.broadcast %72 : vector<1x8x1xf32> to vector<1x8x8xf32>
    %74 = arith.mulf %65, %73 : vector<1x8x8xf32>
    %75 = arith.truncf %74 : vector<1x8x8xf32> to vector<1x8x8xbf16>
    %cst_29 = arith.constant dense<0.000000e+00> : vector<1x8x8xf32>
    %76 = tpu.matmul %75, %57, %cst_29 {dimension_numbers = #tpu.dot_dimension_numbers<[2], [1], [1], [2], [0, 0, 0, 1, 1, 2], [0], [0]>} : vector<1x8x8xbf16>, vector<1x8x8xbf16>, vector<1x8x8xf32> -> vector<1x8x8xf32>
    %77 = vector.shape_cast %76 : vector<1x8x8xf32> to vector<8x8xf32>
    %c0_30 = arith.constant 0 : index
    %c8 = arith.constant 8 : index
    %78 = vector.load %arg10[%c0_30, %c8] : memref<8x32xf32, #tpu.memory_space<vmem>>, vector<8x8xf32>
    tpu.vector_store %arg10[%c0_30, %c8], %77 {strides = array<i32>} : memref<8x32xf32, #tpu.memory_space<vmem>>, vector<8x8xf32>,
    %79 = vector.extract_strided_slice %17 {offsets = [0, 0, 16], sizes = [1, 8, 8], strides = [1, 1, 1]} : vector<1x8x32xf32> to vector<1x8x8xf32>
    %80 = arith.truncf %79 : vector<1x8x8xf32> to vector<1x8x8xbf16>
    %81 = vector.extract_strided_slice %18 {offsets = [0, 0, 16], sizes = [1, 8, 8], strides = [1, 1, 1]} : vector<1x8x32xf32> to vector<1x8x8xf32>
    %82 = arith.truncf %81 : vector<1x8x8xf32> to vector<1x8x8xbf16>
    %83 = vector.extract_strided_slice %19 {offsets = [0, 0, 16], sizes = [1, 8, 8], strides = [1, 1, 1]} : vector<1x8x32xf32> to vector<1x8x8xf32>
    %84 = arith.truncf %83 : vector<1x8x8xf32> to vector<1x8x8xbf16>
    %cst_31 = arith.constant dense<0.000000e+00> : vector<1x8x8xf32>
    %85 = tpu.matmul %80, %82, %cst_31 {dimension_numbers = #tpu.dot_dimension_numbers<[2], [2], [1], [1], [0, 0, 0, 1, 1, 1], [0], [0]>} : vector<1x8x8xbf16>, vector<1x8x8xbf16>, vector<1x8x8xf32> -> vector<1x8x8xf32>
    %cst_32 = arith.constant -1.000000e+06 : f32
    %86 = vector.broadcast %cst_32 : f32 to vector<1x8x8xf32>
    %87 = arith.select %24, %85, %86 : vector<1x8x8xi1>, vector<1x8x8xf32>
    %cst_33 = arith.constant dense<0xFF800000> : vector<1x8xf32>
    %88 = vector.multi_reduction <maximumf>, %87, %cst_33 [2] : vector<1x8x8xf32> to vector<1x8xf32>
    %89 = vector.shape_cast %88 : vector<1x8xf32> to vector<1x8x1xf32>
    %90 = vector.broadcast %89 : vector<1x8x1xf32> to vector<1x8x8xf32>
    %91 = arith.subf %87, %90 : vector<1x8x8xf32>
    %92 = math.exp %91 : vector<1x8x8xf32>
    %cst_34 = arith.constant dense<0.000000e+00> : vector<1x8xf32>
    %93 = vector.multi_reduction <add>, %92, %cst_34 [2] : vector<1x8x8xf32> to vector<1x8xf32>
    %94 = vector.shape_cast %93 : vector<1x8xf32> to vector<1x8x1xf32>
    %95 = tpu.reciprocal %94 {approx = true} : vector<1x8x1xf32> -> vector<1x8x1xf32>
    %96 = arith.mulf %94, %95 : vector<1x8x1xf32>
    %cst_35 = arith.constant 2.000000e+00 : f32
    %97 = vector.broadcast %cst_35 : f32 to vector<1x8x1xf32>
    %98 = arith.subf %97, %96 : vector<1x8x1xf32>
    %99 = arith.mulf %95, %98 : vector<1x8x1xf32>
    %100 = vector.broadcast %99 : vector<1x8x1xf32> to vector<1x8x8xf32>
    %101 = arith.mulf %92, %100 : vector<1x8x8xf32>
    %102 = arith.truncf %101 : vector<1x8x8xf32> to vector<1x8x8xbf16>
    %cst_36 = arith.constant dense<0.000000e+00> : vector<1x8x8xf32>
    %103 = tpu.matmul %102, %84, %cst_36 {dimension_numbers = #tpu.dot_dimension_numbers<[2], [1], [1], [2], [0, 0, 0, 1, 1, 2], [0], [0]>} : vector<1x8x8xbf16>, vector<1x8x8xbf16>, vector<1x8x8xf32> -> vector<1x8x8xf32>
    %104 = vector.shape_cast %103 : vector<1x8x8xf32> to vector<8x8xf32>
    %c0_37 = arith.constant 0 : index
    %c16 = arith.constant 16 : index
    %105 = vector.load %arg10[%c0_37, %c16] : memref<8x32xf32, #tpu.memory_space<vmem>>, vector<8x8xf32>
    tpu.vector_store %arg10[%c0_37, %c16], %104 {strides = array<i32>} : memref<8x32xf32, #tpu.memory_space<vmem>>, vector<8x8xf32>,
    %106 = vector.extract_strided_slice %17 {offsets = [0, 0, 24], sizes = [1, 8, 8], strides = [1, 1, 1]} : vector<1x8x32xf32> to vector<1x8x8xf32>
    %107 = arith.truncf %106 : vector<1x8x8xf32> to vector<1x8x8xbf16>
    %108 = vector.extract_strided_slice %18 {offsets = [0, 0, 24], sizes = [1, 8, 8], strides = [1, 1, 1]} : vector<1x8x32xf32> to vector<1x8x8xf32>
    %109 = arith.truncf %108 : vector<1x8x8xf32> to vector<1x8x8xbf16>
    %110 = vector.extract_strided_slice %19 {offsets = [0, 0, 24], sizes = [1, 8, 8], strides = [1, 1, 1]} : vector<1x8x32xf32> to vector<1x8x8xf32>
    %111 = arith.truncf %110 : vector<1x8x8xf32> to vector<1x8x8xbf16>
    %cst_38 = arith.constant dense<0.000000e+00> : vector<1x8x8xf32>
    %112 = tpu.matmul %107, %109, %cst_38 {dimension_numbers = #tpu.dot_dimension_numbers<[2], [2], [1], [1], [0, 0, 0, 1, 1, 1], [0], [0]>} : vector<1x8x8xbf16>, vector<1x8x8xbf16>, vector<1x8x8xf32> -> vector<1x8x8xf32>
    %cst_39 = arith.constant -1.000000e+06 : f32
    %113 = vector.broadcast %cst_39 : f32 to vector<1x8x8xf32>
    %114 = arith.select %24, %112, %113 : vector<1x8x8xi1>, vector<1x8x8xf32>
    %cst_40 = arith.constant dense<0xFF800000> : vector<1x8xf32>
    %115 = vector.multi_reduction <maximumf>, %114, %cst_40 [2] : vector<1x8x8xf32> to vector<1x8xf32>
    %116 = vector.shape_cast %115 : vector<1x8xf32> to vector<1x8x1xf32>
    %117 = vector.broadcast %116 : vector<1x8x1xf32> to vector<1x8x8xf32>
    %118 = arith.subf %114, %117 : vector<1x8x8xf32>
    %119 = math.exp %118 : vector<1x8x8xf32>
    %cst_41 = arith.constant dense<0.000000e+00> : vector<1x8xf32>
    %120 = vector.multi_reduction <add>, %119, %cst_41 [2] : vector<1x8x8xf32> to vector<1x8xf32>
    %121 = vector.shape_cast %120 : vector<1x8xf32> to vector<1x8x1xf32>
    %122 = tpu.reciprocal %121 {approx = true} : vector<1x8x1xf32> -> vector<1x8x1xf32>
    %123 = arith.mulf %121, %122 : vector<1x8x1xf32>
    %cst_42 = arith.constant 2.000000e+00 : f32
    %124 = vector.broadcast %cst_42 : f32 to vector<1x8x1xf32>
    %125 = arith.subf %124, %123 : vector<1x8x1xf32>
    %126 = arith.mulf %122, %125 : vector<1x8x1xf32>
    %127 = vector.broadcast %126 : vector<1x8x1xf32> to vector<1x8x8xf32>
    %128 = arith.mulf %119, %127 : vector<1x8x8xf32>
    %129 = arith.truncf %128 : vector<1x8x8xf32> to vector<1x8x8xbf16>
    %cst_43 = arith.constant dense<0.000000e+00> : vector<1x8x8xf32>
    %130 = tpu.matmul %129, %111, %cst_43 {dimension_numbers = #tpu.dot_dimension_numbers<[2], [1], [1], [2], [0, 0, 0, 1, 1, 2], [0], [0]>} : vector<1x8x8xbf16>, vector<1x8x8xbf16>, vector<1x8x8xf32> -> vector<1x8x8xf32>
    %131 = vector.shape_cast %130 : vector<1x8x8xf32> to vector<8x8xf32>
    %c0_44 = arith.constant 0 : index
    %c24 = arith.constant 24 : index
    %132 = vector.load %arg10[%c0_44, %c24] : memref<8x32xf32, #tpu.memory_space<vmem>>, vector<8x8xf32>
    tpu.vector_store %arg10[%c0_44, %c24], %131 {strides = array<i32>} : memref<8x32xf32, #tpu.memory_space<vmem>>, vector<8x8xf32>,
    %c0_45 = arith.constant 0 : index
    %c0_46 = arith.constant 0 : index
    %133 = vector.load %arg10[%c0_45, %c0_46] : memref<8x32xf32, #tpu.memory_space<vmem>>, vector<8x32xf32>
    %134 = arith.truncf %133 : vector<8x32xf32> to vector<8x32xbf16>
    %c0_47 = arith.constant 0 : index
    %c0_48 = arith.constant 0 : index
    %135 = vector.load %arg8[%c0_47, %c0_48] : memref<32x32xf32, #tpu.memory_space<vmem>>, vector<32x32xf32>
    %136 = arith.truncf %135 : vector<32x32xf32> to vector<32x32xbf16>
    %cst_49 = arith.constant dense<0.000000e+00> : vector<8x32xf32>
    %137 = tpu.matmul %134, %136, %cst_49 {dimension_numbers = #tpu.dot_dimension_numbers<[1], [0], [0], [1], [0, 0, 1, 1], [], []>} : vector<8x32xbf16>, vector<32x32xbf16>, vector<8x32xf32> -> vector<8x32xf32>
    %c0_50 = arith.constant 0 : index
    %c0_51 = arith.constant 0 : index
    %138 = vector.load %arg9[%c0_50, %c0_51] : memref<8x32xf32, #tpu.memory_space<vmem>>, vector<8x32xf32>
    tpu.vector_store %arg9[%c0_50, %c0_51], %137 {strides = array<i32>} : memref<8x32xf32, #tpu.memory_space<vmem>>, vector<8x32xf32>,
    return
  }
  func.func @transform_0(%arg0: i32) -> (i32, i32) {
    %c0_i32 = arith.constant 0 : i32
    %c0_i32_0 = arith.constant 0 : i32
    return %arg0, %c0_i32 : i32, i32
  }
  func.func @transform_1(%arg0: i32) -> (i32, i32) {
    %c0_i32 = arith.constant 0 : i32
    %c0_i32_0 = arith.constant 0 : i32
    return %arg0, %c0_i32 : i32, i32
  }
  func.func @transform_2(%arg0: i32) -> (i32, i32) {
    %c0_i32 = arith.constant 0 : i32
    %c0_i32_0 = arith.constant 0 : i32
    return %arg0, %c0_i32 : i32, i32
  }
  func.func @transform_3(%arg0: i32) -> (i32, i32) {
    %c0_i32 = arith.constant 0 : i32
    %c0_i32_0 = arith.constant 0 : i32
    return %arg0, %c0_i32 : i32, i32
  }
  func.func @transform_4(%arg0: i32) -> (i32, i32) {
    %c0_i32 = arith.constant 0 : i32
    %c0_i32_0 = arith.constant 0 : i32
    %c0_i32_1 = arith.constant 0 : i32
    return %c0_i32, %c0_i32_0 : i32, i32
  }
  func.func @transform_5(%arg0: i32) -> (i32, i32) {
    %c0_i32 = arith.constant 0 : i32
    %c0_i32_0 = arith.constant 0 : i32
    %c0_i32_1 = arith.constant 0 : i32
    return %c0_i32, %c0_i32_0 : i32, i32
  }
  func.func @transform_6(%arg0: i32) -> (i32, i32) {
    %c0_i32 = arith.constant 0 : i32
    %c0_i32_0 = arith.constant 0 : i32
    %c0_i32_1 = arith.constant 0 : i32
    return %c0_i32, %c0_i32_0 : i32, i32
  }
  func.func @transform_7(%arg0: i32) -> (i32, i32) {
    %c0_i32 = arith.constant 0 : i32
    %c0_i32_0 = arith.constant 0 : i32
    %c0_i32_1 = arith.constant 0 : i32
    return %c0_i32, %c0_i32_0 : i32, i32
  }
  func.func @transform_8(%arg0: i32) -> (i32, i32) {
    %c0_i32 = arith.constant 0 : i32
    %c0_i32_0 = arith.constant 0 : i32
    return %arg0, %c0_i32 : i32, i32
  }
}

</mosaic_0001>

<llo_original>
// kernel: tpu_custom_call.1
$region0: #{tpu_custom_call.1}
  #allocation0 [shape = 'u32[]', space=smem, size = 0x4, offset = 0x4, fixed_abs, tag = 'smem constant byte address 0x4 - core index']
  #allocation1 [shape = 'u32[144,128]{1,0:T(1,128)}', space=vmem, size = 0x12000, scoped, tag = 'internal scratch']
  #allocation2 [shape = 'f32[8,32]{1,0:T(8,128)}', space=vmem, size = 0x1000, scoped, tag = 'scratch operand']
  %s0 = inlined_call_operand.hbm [shape: f32[16,32], index: 0, kind: input, shape index: {}]
  %s1 = inlined_call_operand.hbm [shape: f32[16,32], index: 1, kind: input, shape index: {}]
  %s2 = inlined_call_operand.hbm [shape: f32[16,32], index: 2, kind: input, shape index: {}]
  %s3 = inlined_call_operand.vmem [shape: s32[16,1], index: 3, kind: input, shape index: {}]
  %s4 = inlined_call_operand.vmem [shape: f32[32,32], index: 4, kind: input, shape index: {}]
  %s5 = inlined_call_operand.hbm [shape: f32[32,32], index: 5, kind: input, shape index: {}]
  %s6 = inlined_call_operand.hbm [shape: f32[32,32], index: 6, kind: input, shape index: {}]
  %s7 = inlined_call_operand.hbm [shape: f32[32,32], index: 7, kind: input, shape index: {}]
  %s8 = inlined_call_operand.hbm [shape: f32[16,32], index: 8, kind: output, shape index: {}]
  %s9 = sld [smem:[#allocation0]]
  $region89: #{tpu_custom_call.1} parent=0
    _
  %s11 = ssub.s32 1, %s9
  %s12 = scalar_select 0, %s11, %s9
  $region1: #{tpu_custom_call.1} parent=0
    #allocation3 [shape = 'u8[8192]{0}', space=vmem, size = 0x2000, scoped, tag = 'input window, operand 0']
    #allocation4 [shape = 's32[2]{0}', space=sflag, size = 0x8, scoped, tag = 'scoped memory for tpu_custom_call.1']
    #allocation5 [shape = 's32[2]{0}', space=sflag, size = 0x8, scoped, tag = 'scoped memory for tpu_custom_call.1']
    #allocation6 [shape = 'u8[8192]{0}', space=vmem, size = 0x2000, scoped, tag = 'input window, operand 1']
    #allocation7 [shape = 's32[2]{0}', space=sflag, size = 0x8, scoped, tag = 'scoped memory for tpu_custom_call.1']
    #allocation8 [shape = 'u8[8192]{0}', space=vmem, size = 0x2000, scoped, tag = 'input window, operand 2']
    #allocation9 [shape = 'u8[16384]{0}', space=vmem, size = 0x4000, scoped, tag = 'input window, operand 5, single buffered']
    #allocation10 [shape = 's32[1]{0}', space=sflag, size = 0x4, scoped, tag = 'scoped memory for tpu_custom_call.1']
    #allocation11 [shape = 'u8[16384]{0}', space=vmem, size = 0x4000, scoped, tag = 'input window, operand 6, single buffered']
    #allocation12 [shape = 'u8[16384]{0}', space=vmem, size = 0x4000, scoped, tag = 'input window, operand 7, single buffered']
    #allocation13 [shape = 's32[1]{0}', space=sflag, size = 0x4, scoped, tag = 'scoped memory for tpu_custom_call.1']
    #allocation14 [shape = 'u8[8192]{0}', space=vmem, size = 0x2000, scoped, tag = 'output window, operand 0']
    %13 = vsyncpa [#allocation4], 0
    %s14 = scalar_lea.sflag [#allocation4], 1
    %15 = vsyncpa %s14, 0
    %16 = vsyncpa [#allocation7], 0
    %s17 = scalar_lea.sflag [#allocation7], 1
    %18 = vsyncpa %s17, 0
    %19 = vsyncpa [#allocation10], 0
    %20 = vsyncpa [#allocation13], 0
    %21 = vsyncpa [#allocation5], 0
    %s22 = scalar_lea.sflag [#allocation5], 1
    %23 = vsyncpa %s22, 0
    loop: start=0, step=1, limit=4
    $region2: #{tpu_custom_call.1} parent=1 // loop_pre_header
      _
    $region3: #{tpu_custom_call.1} parent=1 // loop_header
      %s25 = sphi 0, %s29
      %p26 = scmp.ge.s32.totalorder %s25, 4
      %s35 = sphi 0, %s37
      %s38 = sphi 0, %s35
      %s39 = sphi 0, %s38
      %s55 = sphi 0, %s39
      %s61 = sphi 0, %s63
      %s64 = sphi 0, %s61
      %s65 = sphi 0, %s64
      %s81 = sphi 0, %s65
      %s87 = sphi 0, %s89
      %s90 = sphi 0, %s87
      %s91 = sphi 0, %s90
      %s107 = sphi 0, %s91
      %s113 = sphi 0, %s115
      %s116 = sphi 0, %s113
      %s117 = sphi 0, %s116
      %s133 = sphi 0, %s117
      %s137 = sphi 0, %s137
      %s139 = sphi 0, %s137
      %s140 = sphi 0, %s139
      %s154 = sphi 0, %s140
      %s158 = sphi 0, %s158
      %s160 = sphi 0, %s158
      %s161 = sphi 0, %s160
      %s175 = sphi 0, %s161
      %s179 = sphi 0, %s179
      %s181 = sphi 0, %s179
      %s182 = sphi 0, %s181
      %s196 = sphi 0, %s182
      %s200 = sphi 0, %s200
      %s202 = sphi 0, %s200
      %s203 = sphi 0, %s202
      %s217 = sphi 0, %s203
      %s223 = sphi 0, %s225
      %s226 = sphi 0, %s223
      %s227 = sphi 0, %s226
      %s243 = sphi 0, %s227
    $region4: #{tpu_custom_call.1} parent=1 // loop_header_branch
      %28 = sbr.rel (%p26) target = $region8
    $region5: #{tpu_custom_call.1} parent=1 // loop_body
      %s30 = ssub.s32 %s25, 1
      %s31 = ssub.s32 %s25, 2
      %s32 = sadd.s32 %s25, 1
      %s33 = ssub.s32 %s25, %s32
      %p34 = scmp.eq.s32.totalorder %s33, 0
      %s36 = sadd.s32 %s35, 1
      %s37 = scalar_select %p34, %s35, %s36
      %p40 = pneg %p34
      %p41 = scmp.eq.s32.totalorder %s25, 1
      %p42 = por %p40, %p41
      %p43 = scmp.ne.s32.totalorder %s35, %s38
      %p44 = scmp.eq.s32.totalorder %s25, 0
      %p45 = por %p43, %p44
      %p46 = scmp.ne.s32.totalorder %s35, %s38
      %p47 = scmp.eq.s32.totalorder %s30, 1
      %p48 = por %p46, %p47
      %p49 = scmp.ne.s32.totalorder %s38, %s39
      %p50 = scmp.eq.s32.totalorder %s30, 0
      %p51 = por %p49, %p50
      %p52 = scmp.ne.s32.totalorder %s38, %s39
      %p53 = scmp.eq.s32.totalorder %s31, 1
      %p54 = por %p52, %p53
      %p56 = scmp.ne.s32.totalorder %s39, %s55
      %p57 = scmp.eq.s32.totalorder %s31, 0
      %p58 = por %p56, %p57
      %s59 = ssub.s32 %s25, %s32
      %p60 = scmp.eq.s32.totalorder %s59, 0
      %s62 = sadd.s32 %s61, 1
      %s63 = scalar_select %p60, %s61, %s62
      %p66 = pneg %p60
      %p67 = scmp.eq.s32.totalorder %s25, 1
      %p68 = por %p66, %p67
      %p69 = scmp.ne.s32.totalorder %s61, %s64
      %p70 = scmp.eq.s32.totalorder %s25, 0
      %p71 = por %p69, %p70
      %p72 = scmp.ne.s32.totalorder %s61, %s64
      %p73 = scmp.eq.s32.totalorder %s30, 1
      %p74 = por %p72, %p73
      %p75 = scmp.ne.s32.totalorder %s64, %s65
      %p76 = scmp.eq.s32.totalorder %s30, 0
      %p77 = por %p75, %p76
      %p78 = scmp.ne.s32.totalorder %s64, %s65
      %p79 = scmp.eq.s32.totalorder %s31, 1
      %p80 = por %p78, %p79
      %p82 = scmp.ne.s32.totalorder %s65, %s81
      %p83 = scmp.eq.s32.totalorder %s31, 0
      %p84 = por %p82, %p83
      %s85 = ssub.s32 %s25, %s32
      %p86 = scmp.eq.s32.totalorder %s85, 0
      %s88 = sadd.s32 %s87, 1
      %s89 = scalar_select %p86, %s87, %s88
      %p92 = pneg %p86
      %p93 = scmp.eq.s32.totalorder %s25, 1
      %p94 = por %p92, %p93
      %p95 = scmp.ne.s32.totalorder %s87, %s90
      %p96 = scmp.eq.s32.totalorder %s25, 0
      %p97 = por %p95, %p96
      %p98 = scmp.ne.s32.totalorder %s87, %s90
      %p99 = scmp.eq.s32.totalorder %s30, 1
      %p100 = por %p98, %p99
      %p101 = scmp.ne.s32.totalorder %s90, %s91
      %p102 = scmp.eq.s32.totalorder %s30, 0
      %p103 = por %p101, %p102
      %p104 = scmp.ne.s32.totalorder %s90, %s91
      %p105 = scmp.eq.s32.totalorder %s31, 1
      %p106 = por %p104, %p105
      %p108 = scmp.ne.s32.totalorder %s91, %s107
      %p109 = scmp.eq.s32.totalorder %s31, 0
      %p110 = por %p108, %p109
      %s111 = ssub.s32 %s25, %s32
      %p112 = scmp.eq.s32.totalorder %s111, 0
      %s114 = sadd.s32 %s113, 1
      %s115 = scalar_select %p112, %s113, %s114
      %p118 = pneg %p112
      %p119 = scmp.eq.s32.totalorder %s25, 1
      %p120 = por %p118, %p119
      %p121 = scmp.ne.s32.totalorder %s113, %s116
      %p122 = scmp.eq.s32.totalorder %s25, 0
      %p123 = por %p121, %p122
      %p124 = scmp.ne.s32.totalorder %s113, %s116
      %p125 = scmp.eq.s32.totalorder %s30, 1
      %p126 = por %p124, %p125
      %p127 = scmp.ne.s32.totalorder %s116, %s117
      %p128 = scmp.eq.s32.totalorder %s30, 0
      %p129 = por %p127, %p128
      %p130 = scmp.ne.s32.totalorder %s116, %s117
      %p131 = scmp.eq.s32.totalorder %s31, 1
      %p132 = por %p130, %p131
      %p134 = scmp.ne.s32.totalorder %s117, %s133
      %p135 = scmp.eq.s32.totalorder %s31, 0
      %p136 = por %p134, %p135
      %s138 = sadd.s32 %s137, 1
      %p141 = scmp.eq.s32.totalorder %s25, 1
      %p142 = scmp.ne.s32.totalorder %s137, %s139
      %p143 = scmp.eq.s32.totalorder %s25, 0
      %p144 = por %p142, %p143
      %p145 = scmp.ne.s32.totalorder %s137, %s139
      %p146 = scmp.eq.s32.totalorder %s30, 1
      %p147 = por %p145, %p146
      %p148 = scmp.ne.s32.totalorder %s139, %s140
      %p149 = scmp.eq.s32.totalorder %s30, 0
      %p150 = por %p148, %p149
      %p151 = scmp.ne.s32.totalorder %s139, %s140
      %p152 = scmp.eq.s32.totalorder %s31, 1
      %p153 = por %p151, %p152
      %p155 = scmp.ne.s32.totalorder %s140, %s154
      %p156 = scmp.eq.s32.totalorder %s31, 0
      %p157 = por %p155, %p156
      %s159 = sadd.s32 %s158, 1
      %p162 = scmp.eq.s32.totalorder %s25, 1
      %p163 = scmp.ne.s32.totalorder %s158, %s160
      %p164 = scmp.eq.s32.totalorder %s25, 0
      %p165 = por %p163, %p164
      %p166 = scmp.ne.s32.totalorder %s158, %s160
      %p167 = scmp.eq.s32.totalorder %s30, 1
      %p168 = por %p166, %p167
      %p169 = scmp.ne.s32.totalorder %s160, %s161
      %p170 = scmp.eq.s32.totalorder %s30, 0
      %p171 = por %p169, %p170
      %p172 = scmp.ne.s32.totalorder %s160, %s161
      %p173 = scmp.eq.s32.totalorder %s31, 1
      %p174 = por %p172, %p173
      %p176 = scmp.ne.s32.totalorder %s161, %s175
      %p177 = scmp.eq.s32.totalorder %s31, 0
      %p178 = por %p176, %p177
      %s180 = sadd.s32 %s179, 1
      %p183 = scmp.eq.s32.totalorder %s25, 1
      %p184 = scmp.ne.s32.totalorder %s179, %s181
      %p185 = scmp.eq.s32.totalorder %s25, 0
      %p186 = por %p184, %p185
      %p187 = scmp.ne.s32.totalorder %s179, %s181
      %p188 = scmp.eq.s32.totalorder %s30, 1
      %p189 = por %p187, %p188
      %p190 = scmp.ne.s32.totalorder %s181, %s182
      %p191 = scmp.eq.s32.totalorder %s30, 0
      %p192 = por %p190, %p191
      %p193 = scmp.ne.s32.totalorder %s181, %s182
      %p194 = scmp.eq.s32.totalorder %s31, 1
      %p195 = por %p193, %p194
      %p197 = scmp.ne.s32.totalorder %s182, %s196
      %p198 = scmp.eq.s32.totalorder %s31, 0
      %p199 = por %p197, %p198
      %s201 = sadd.s32 %s200, 1
      %p204 = scmp.eq.s32.totalorder %s25, 1
      %p205 = scmp.ne.s32.totalorder %s200, %s202
      %p206 = scmp.eq.s32.totalorder %s25, 0
      %p207 = por %p205, %p206
      %p208 = scmp.ne.s32.totalorder %s200, %s202
      %p209 = scmp.eq.s32.totalorder %s30, 1
      %p210 = por %p208, %p209
      %p211 = scmp.ne.s32.totalorder %s202, %s203
      %p212 = scmp.eq.s32.totalorder %s30, 0
      %p213 = por %p211, %p212
      %p214 = scmp.ne.s32.totalorder %s202, %s203
      %p215 = scmp.eq.s32.totalorder %s31, 1
      %p216 = por %p214, %p215
      %p218 = scmp.ne.s32.totalorder %s203, %s217
      %p219 = scmp.eq.s32.totalorder %s31, 0
      %p220 = por %p218, %p219
      %s221 = ssub.s32 %s25, %s32
      %p222 = scmp.eq.s32.totalorder %s221, 0
      %s224 = sadd.s32 %s223, 1
      %s225 = scalar_select %p222, %s223, %s224
      %p228 = pneg %p222
      %p229 = scmp.eq.s32.totalorder %s25, 1
      %p230 = por %p228, %p229
      %p231 = scmp.ne.s32.totalorder %s223, %s226
      %p232 = scmp.eq.s32.totalorder %s25, 0
      %p233 = por %p231, %p232
      %p234 = scmp.ne.s32.totalorder %s223, %s226
      %p235 = scmp.eq.s32.totalorder %s30, 1
      %p236 = por %p234, %p235
      %p237 = scmp.ne.s32.totalorder %s226, %s227
      %p238 = scmp.eq.s32.totalorder %s30, 0
      %p239 = por %p237, %p238
      %p240 = scmp.ne.s32.totalorder %s226, %s227
      %p241 = scmp.eq.s32.totalorder %s31, 1
      %p242 = por %p240, %p241
      %p244 = scmp.ne.s32.totalorder %s227, %s243
      %p245 = scmp.eq.s32.totalorder %s31, 0
      %p246 = por %p244, %p245
      %p247 = scmp.le.s32.totalorder 1, %s25
      %p248 = scmp.lt.s32.totalorder %s25, 3
      %p249 = pnand %p247, %p248
      %p250 = pneg %p249
      // Predicated region
      $region9: #{tpu_custom_call.1} parent=5 // pred_check
        _
      $region10: #{tpu_custom_call.1} parent=5 // pred_check_branch
        %252 = sbr.rel (%p249) target = $region12
      $region11: #{tpu_custom_call.1} parent=5 // pred_region
        %s253 = ssub.s32 %s25, 1
        // Predicated region
        $region13: #{tpu_custom_call.1} parent=11 // pred_check
          %p254 = pneg %p150
        $region14: #{tpu_custom_call.1} parent=11 // pred_check_branch
          %256 = sbr.rel (%p254) target = $region16
        $region15: #{tpu_custom_call.1} parent=11 // pred_region
          _
        $region16: #{tpu_custom_call.1} parent=11 // pred_fallthru
          _
        // Predicated region
        $region17: #{tpu_custom_call.1} parent=11 // pred_check
          %p257 = pneg %p171
        $region18: #{tpu_custom_call.1} parent=11 // pred_check_branch
          %259 = sbr.rel (%p257) target = $region20
        $region19: #{tpu_custom_call.1} parent=11 // pred_region
          %s261 = ssub.s32 512, 512
          %262 = vsyncadd [#allocation10], %s261
          %s263 = sshll.u32 [#allocation9], 4
          %s264 = int_to_ptr.vmem [resolvable:$true] %s263
          %269 = dma.hbm_to_vmem [thread:$0]  %s5, 512, %s264, [#allocation10], 128, 128, 8
        $region20: #{tpu_custom_call.1} parent=11 // pred_fallthru
          _
        // Predicated region
        $region21: #{tpu_custom_call.1} parent=11 // pred_check
          %p270 = pneg %p192
        $region22: #{tpu_custom_call.1} parent=11 // pred_check_branch
          %272 = sbr.rel (%p270) target = $region24
        $region23: #{tpu_custom_call.1} parent=11 // pred_region
          %s274 = ssub.s32 512, 512
          %275 = vsyncadd [#allocation10], %s274
          %s276 = sshll.u32 [#allocation11], 4
          %s277 = int_to_ptr.vmem [resolvable:$true] %s276
          %282 = dma.hbm_to_vmem [thread:$0]  %s6, 512, %s277, [#allocation10], 128, 128, 8
        $region24: #{tpu_custom_call.1} parent=11 // pred_fallthru
          _
        // Predicated region
        $region25: #{tpu_custom_call.1} parent=11 // pred_check
          %p283 = pneg %p213
        $region26: #{tpu_custom_call.1} parent=11 // pred_check_branch
          %285 = sbr.rel (%p283) target = $region28
        $region27: #{tpu_custom_call.1} parent=11 // pred_region
          %s287 = ssub.s32 512, 512
          %288 = vsyncadd [#allocation13], %s287
          %s289 = sshll.u32 [#allocation12], 4
          %s290 = int_to_ptr.vmem [resolvable:$true] %s289
          %295 = dma.hbm_to_vmem [thread:$0]  %s7, 512, %s290, [#allocation13], 128, 128, 8
        $region28: #{tpu_custom_call.1} parent=11 // pred_fallthru
          _
      $region12: #{tpu_custom_call.1} parent=5 // pred_fallthru
        _
      %p296 = scmp.lt.s32.totalorder %s25, 2
      // Predicated region
      $region29: #{tpu_custom_call.1} parent=5 // pred_check
        %p297 = pneg %p296
      $region30: #{tpu_custom_call.1} parent=5 // pred_check_branch
        %299 = sbr.rel (%p297) target = $region32
      $region31: #{tpu_custom_call.1} parent=5 // pred_region
        // Predicated region
        $region33: #{tpu_custom_call.1} parent=31 // pred_check
          %p300 = pneg %p45
        $region34: #{tpu_custom_call.1} parent=31 // pred_check_branch
          %302 = sbr.rel (%p300) target = $region36
        $region35: #{tpu_custom_call.1} parent=31 // pred_region
          %s303 = sand.u32 %s35, 1
          %s304 = scalar_lea.sflag [#allocation4], %s303
          %s305 = sand.u32 %s35, 1
          %s306 = smul.addr %s305, 8
          %s307 = scalar_lea.vmem [#allocation3], %s306
          %s309 = ssub.s32 128, 128
          %310 = vsyncadd %s304, %s309
          %s311 = smul.addr %s25, 128
          %s312 = scalar_lea.hbm %s0, %s311
          %s314 = sshll.u32 %s307, 4
          %s315 = int_to_ptr.vmem [resolvable:$true] %s314
          %317 = dma.hbm_to_vmem [thread:$0]  %s312, 128, %s315, %s304
        $region36: #{tpu_custom_call.1} parent=31 // pred_fallthru
          _
        // Predicated region
        $region37: #{tpu_custom_call.1} parent=31 // pred_check
          %p318 = pneg %p71
        $region38: #{tpu_custom_call.1} parent=31 // pred_check_branch
          %320 = sbr.rel (%p318) target = $region40
        $region39: #{tpu_custom_call.1} parent=31 // pred_region
          %s321 = sand.u32 %s25, 1
          %s322 = scalar_lea.sflag [#allocation7], %s321
          %s323 = sand.u32 %s61, 1
          %s324 = smul.addr %s323, 8
          %s325 = scalar_lea.vmem [#allocation6], %s324
          %s327 = ssub.s32 128, 128
          %328 = vsyncadd %s322, %s327
          %s329 = smul.addr %s25, 128
          %s330 = scalar_lea.hbm %s1, %s329
          %s332 = sshll.u32 %s325, 4
          %s333 = int_to_ptr.vmem [resolvable:$true] %s332
          %335 = dma.hbm_to_vmem [thread:$0]  %s330, 128, %s333, %s322
        $region40: #{tpu_custom_call.1} parent=31 // pred_fallthru
          _
        // Predicated region
        $region41: #{tpu_custom_call.1} parent=31 // pred_check
          %p336 = pneg %p97
        $region42: #{tpu_custom_call.1} parent=31 // pred_check_branch
          %338 = sbr.rel (%p336) target = $region44
        $region43: #{tpu_custom_call.1} parent=31 // pred_region
          %s339 = sand.u32 %s25, 1
          %s340 = scalar_lea.sflag [#allocation7], %s339
          %s341 = sand.u32 %s87, 1
          %s342 = smul.addr %s341, 8
          %s343 = scalar_lea.vmem [#allocation8], %s342
          %s345 = ssub.s32 128, 128
          %346 = vsyncadd %s340, %s345
          %s347 = smul.addr %s25, 128
          %s348 = scalar_lea.hbm %s2, %s347
          %s350 = sshll.u32 %s343, 4
          %s351 = int_to_ptr.vmem [resolvable:$true] %s350
          %353 = dma.hbm_to_vmem [thread:$0]  %s348, 128, %s351, %s340
        $region44: #{tpu_custom_call.1} parent=31 // pred_fallthru
          _
        // Predicated region
        $region45: #{tpu_custom_call.1} parent=31 // pred_check
          %p354 = pneg %p123
        $region46: #{tpu_custom_call.1} parent=31 // pred_check_branch
          %356 = sbr.rel (%p354) target = $region48
        $region47: #{tpu_custom_call.1} parent=31 // pred_region
          %p357 = scmp.lt.s32.totalorder %s25, 1
          %s358 = scalar_select %p357, %s25, 1
          %s359 = smul.addr %s358, 8
          %s360 = scalar_lea.vmem %s3, %s359
        $region48: #{tpu_custom_call.1} parent=31 // pred_fallthru
          _
      $region32: #{tpu_custom_call.1} parent=5 // pred_fallthru
        _
      %p361 = scmp.le.s32.totalorder 1, %s25
      %p362 = scmp.lt.s32.totalorder %s25, 3
      %p363 = pnand %p361, %p362
      %p364 = pneg %p363
      // Predicated region
      $region49: #{tpu_custom_call.1} parent=5 // pred_check
        _
      $region50: #{tpu_custom_call.1} parent=5 // pred_check_branch
        %366 = sbr.rel (%p363) target = $region52
      $region51: #{tpu_custom_call.1} parent=5 // pred_region
        %s367 = ssub.s32 %s25, 1
        %s368 = sand.u32 %s38, 1
        %s369 = scalar_lea.sflag [#allocation4], %s368
        %s370 = sand.u32 %s38, 1
        %s371 = smul.addr %s370, 8
        %s372 = scalar_lea.vmem [#allocation3], %s371
        // Predicated region
        $region53: #{tpu_custom_call.1} parent=51 // pred_check
          %p373 = pneg %p51
        $region54: #{tpu_custom_call.1} parent=51 // pred_check_branch
          %375 = sbr.rel (%p373) target = $region56
        $region55: #{tpu_custom_call.1} parent=51 // pred_region
          %376 = dma.done %s369, 128
        $region56: #{tpu_custom_call.1} parent=51 // pred_fallthru
          _
        %s377 = sand.u32 %s30, 1
        %s378 = scalar_lea.sflag [#allocation7], %s377
        %s379 = sand.u32 %s64, 1
        %s380 = smul.addr %s379, 8
        %s381 = scalar_lea.vmem [#allocation6], %s380
        // Predicated region
        $region57: #{tpu_custom_call.1} parent=51 // pred_check
          %p382 = pneg %p77
        $region58: #{tpu_custom_call.1} parent=51 // pred_check_branch
          %384 = sbr.rel (%p382) target = $region60
        $region59: #{tpu_custom_call.1} parent=51 // pred_region
          %385 = dma.done %s378, 128
        $region60: #{tpu_custom_call.1} parent=51 // pred_fallthru
          _
        %s386 = sand.u32 %s30, 1
        %s387 = scalar_lea.sflag [#allocation7], %s386
        %s388 = sand.u32 %s90, 1
        %s389 = smul.addr %s388, 8
        %s390 = scalar_lea.vmem [#allocation8], %s389
        // Predicated region
        $region61: #{tpu_custom_call.1} parent=51 // pred_check
          %p391 = pneg %p103
        $region62: #{tpu_custom_call.1} parent=51 // pred_check_branch
          %393 = sbr.rel (%p391) target = $region64
        $region63: #{tpu_custom_call.1} parent=51 // pred_region
          %394 = dma.done %s387, 128
        $region64: #{tpu_custom_call.1} parent=51 // pred_fallthru
          _
        // Predicated region
        $region65: #{tpu_custom_call.1} parent=51 // pred_check
          %p395 = pneg %p171
        $region66: #{tpu_custom_call.1} parent=51 // pred_check_branch
          %397 = sbr.rel (%p395) target = $region68
        $region67: #{tpu_custom_call.1} parent=51 // pred_region
          %398 = dma.done [#allocation10], 512
        $region68: #{tpu_custom_call.1} parent=51 // pred_fallthru
          _
        // Predicated region
        $region69: #{tpu_custom_call.1} parent=51 // pred_check
          %p399 = pneg %p192
        $region70: #{tpu_custom_call.1} parent=51 // pred_check_branch
          %401 = sbr.rel (%p399) target = $region72
        $region71: #{tpu_custom_call.1} parent=51 // pred_region
          %402 = dma.done [#allocation10], 512
        $region72: #{tpu_custom_call.1} parent=51 // pred_fallthru
          _
        // Predicated region
        $region73: #{tpu_custom_call.1} parent=51 // pred_check
          %p403 = pneg %p213
        $region74: #{tpu_custom_call.1} parent=51 // pred_check_branch
          %405 = sbr.rel (%p403) target = $region76
        $region75: #{tpu_custom_call.1} parent=51 // pred_region
          %406 = dma.done [#allocation13], 512
        $region76: #{tpu_custom_call.1} parent=51 // pred_fallthru
          _
        %s407 = sand.u32 %s38, 1
        %s408 = scalar_lea.sflag [#allocation4], %s407
        %s409 = sand.u32 %s38, 1
        %s410 = smul.addr %s409, 8
        %s411 = scalar_lea.vmem [#allocation3], %s410
        %p412 = pneg %p51
        %p413 = pneg %p48
        %s414 = sand.u32 %s30, 1
        %s415 = scalar_lea.sflag [#allocation7], %s414
        %s416 = sand.u32 %s64, 1
        %s417 = smul.addr %s416, 8
        %s418 = scalar_lea.vmem [#allocation6], %s417
        %p419 = pneg %p77
        %p420 = pneg %p74
        %s421 = sand.u32 %s30, 1
        %s422 = scalar_lea.sflag [#allocation7], %s421
        %s423 = sand.u32 %s90, 1
        %s424 = smul.addr %s423, 8
        %s425 = scalar_lea.vmem [#allocation8], %s424
        %p426 = pneg %p103
        %p427 = pneg %p100
        %p428 = scmp.lt.s32.totalorder %s30, 1
        %s429 = scalar_select %p428, %s30, 1
        %s430 = smul.addr %s429, 8
        %s431 = scalar_lea.vmem %s3, %s430
        %p432 = pneg %p129
        %p433 = pneg %p126
        %p434 = pneg %p150
        %p435 = pneg %p147
        %p436 = pneg %p171
        %p437 = pneg %p168
        %p438 = pneg %p192
        %p439 = pneg %p189
        %p440 = pneg %p213
        %p441 = pneg %p210
        %p442 = pneg %p239
        %p443 = pneg %p236
        %s444 = sand.u32 %s226, 1
        %s445 = scalar_lea.sflag [#allocation5], %s444
        %s446 = sand.u32 %s226, 1
        %s447 = smul.addr %s446, 8
        %s448 = scalar_lea.vmem [#allocation14], %s447
        %p449 = scmp.lt.s32.totalorder %s30, 1
        %s450 = scalar_select %p449, %s30, 1
        %s451 = smul.addr %s450, 8
        %s452 = scalar_lea.vmem %s3, %s451
        %v454 = vld [vmem:[%s372] sm:$0xff]
        %v455 = vpack.c.bf16 %v454, %v454
        %v456 = vld [vmem:[%s4] sm:$0xff]
        %v457 = vld [vmem:[%s4 + $0x8] sm:$0xff]
        %v458 = vld [vmem:[%s4 + $0x10] sm:$0xff]
        %v459 = vld [vmem:[%s4 + $0x18] sm:$0xff]
        %v460 = vpack.c.bf16 %v457, %v456
        %v461 = vpack.c.bf16 %v459, %v458
        %vm462 = vcmask 261120
        %v464 = vsel %vm462, %v455, 0
        %466 = vmatprep.subr.bf16.mxu0 0
        %467 = vmatpush1.bf16.msra.mxu0 %v460
        %468 = vmatprep.subr.bf16.mxu0 0
        %469 = vmatpush1.bf16.msra.mxu0 %v461
        %470 = vmatprep.subr.bf16.mxu0 0
        %471 = vmatpush1.bf16.msra.mxu0 0
        %472 = vmatprep.subr.bf16.mxu0 0
        %473 = vmatpush1.bf16.msra.mxu0 0
        %474 = vmatprep.subr.bf16.mxu0 0
        %475 = vmatpush1.bf16.msra.mxu0 0
        %476 = vmatprep.subr.bf16.mxu0 0
        %477 = vmatpush1.bf16.msra.mxu0 0
        %478 = vmatprep.subr.bf16.mxu0 0
        %479 = vmatpush1.bf16.msra.mxu0 0
        %480 = vmatprep.subr.bf16.mxu0 0
        %481 = vmatpush1.bf16.msra.mxu0 0
        %482 = vmatprep.subr.bf16.mxu0 0
        %483 = vmatpush1.bf16.msra.mxu0 0
        %484 = vmatprep.subr.bf16.mxu0 0
        %485 = vmatpush1.bf16.msra.mxu0 0
        %486 = vmatprep.subr.bf16.mxu0 0
        %487 = vmatpush1.bf16.msra.mxu0 0
        %488 = vmatprep.subr.bf16.mxu0 0
        %489 = vmatpush1.bf16.msra.mxu0 0
        %490 = vmatprep.subr.bf16.mxu0 0
        %491 = vmatpush1.bf16.msra.mxu0 0
        %492 = vmatprep.subr.bf16.mxu0 0
        %493 = vmatpush1.bf16.msra.mxu0 0
        %494 = vmatprep.subr.bf16.mxu0 0
        %495 = vmatpush1.bf16.msra.mxu0 0
        %496 = vmatprep.subr.bf16.mxu0 0
        %497 = vmatpush1.bf16.msra.mxu0 0
        %498 = vmatprep.mubr.bf16.mxu0 0
        %499 = vmatmul.mubr.bf16.gmra.mrb[0].mxu0 %v464
        %v500 = vpop.f32.mrb[0].mxu0
        %v501 = vadd.f32 0.0, %v500
        %v502 = vpop.f32.mrb[0].mxu0
        %v503 = vpop.f32.mrb[0].mxu0
        %v504 = vpop.f32.mrb[0].mxu0
        %505 = vdwg.mxu0
        %v506 = vld [vmem:[%s381] sm:$0xff]
        %v507 = vpack.c.bf16 %v506, %v506
        %v508 = vld [vmem:[#allocation9] sm:$0xff]
        %v509 = vld [vmem:[#allocation9 + $0x8] sm:$0xff]
        %v510 = vld [vmem:[#allocation9 + $0x10] sm:$0xff]
        %v511 = vld [vmem:[#allocation9 + $0x18] sm:$0xff]
        %v512 = vpack.c.bf16 %v509, %v508
        %v513 = vpack.c.bf16 %v511, %v510
        %v515 = vsel %vm462, %v507, 0
        %517 = vmatprep.subr.bf16.mxu0 0
        %518 = vmatpush1.bf16.msra.mxu0 %v512
        %519 = vmatprep.subr.bf16.mxu0 0
        %520 = vmatpush1.bf16.msra.mxu0 %v513
        %521 = vmatprep.subr.bf16.mxu0 0
        %522 = vmatpush1.bf16.msra.mxu0 0
        %523 = vmatprep.subr.bf16.mxu0 0
        %524 = vmatpush1.bf16.msra.mxu0 0
        %525 = vmatprep.subr.bf16.mxu0 0
        %526 = vmatpush1.bf16.msra.mxu0 0
        %527 = vmatprep.subr.bf16.mxu0 0
        %528 = vmatpush1.bf16.msra.mxu0 0
        %529 = vmatprep.subr.bf16.mxu0 0
        %530 = vmatpush1.bf16.msra.mxu0 0
        %531 = vmatprep.subr.bf16.mxu0 0
        %532 = vmatpush1.bf16.msra.mxu0 0
        %533 = vmatprep.subr.bf16.mxu0 0
        %534 = vmatpush1.bf16.msra.mxu0 0
        %535 = vmatprep.subr.bf16.mxu0 0
        %536 = vmatpush1.bf16.msra.mxu0 0
        %537 = vmatprep.subr.bf16.mxu0 0
        %538 = vmatpush1.bf16.msra.mxu0 0
        %539 = vmatprep.subr.bf16.mxu0 0
        %540 = vmatpush1.bf16.msra.mxu0 0
        %541 = vmatprep.subr.bf16.mxu0 0
        %542 = vmatpush1.bf16.msra.mxu0 0
        %543 = vmatprep.subr.bf16.mxu0 0
        %544 = vmatpush1.bf16.msra.mxu0 0
        %545 = vmatprep.subr.bf16.mxu0 0
        %546 = vmatpush1.bf16.msra.mxu0 0
        %547 = vmatprep.subr.bf16.mxu0 0
        %548 = vmatpush1.bf16.msra.mxu0 0
        %549 = vmatprep.mubr.bf16.mxu0 0
        %550 = vmatmul.mubr.bf16.gmra.mrb[0].mxu0 %v515
        %v551 = vpop.f32.mrb[0].mxu0
        %v552 = vadd.f32 0.0, %v551
        %v553 = vpop.f32.mrb[0].mxu0
        %v554 = vpop.f32.mrb[0].mxu0
        %v555 = vpop.f32.mrb[0].mxu0
        %556 = vdwg.mxu0
        %v557 = vld [vmem:[%s390] sm:$0xff]
        %v558 = vpack.c.bf16 %v557, %v557
        %v559 = vld [vmem:[#allocation11] sm:$0xff]
        %v560 = vld [vmem:[#allocation11 + $0x8] sm:$0xff]
        %v561 = vld [vmem:[#allocation11 + $0x10] sm:$0xff]
        %v562 = vld [vmem:[#allocation11 + $0x18] sm:$0xff]
        %v563 = vpack.c.bf16 %v560, %v559
        %v564 = vpack.c.bf16 %v562, %v561
        %v566 = vsel %vm462, %v558, 0
        %568 = vmatprep.subr.bf16.mxu0 0
        %569 = vmatpush1.bf16.msra.mxu0 %v563
        %570 = vmatprep.subr.bf16.mxu0 0
        %571 = vmatpush1.bf16.msra.mxu0 %v564
        %572 = vmatprep.subr.bf16.mxu0 0
        %573 = vmatpush1.bf16.msra.mxu0 0
        %574 = vmatprep.subr.bf16.mxu0 0
        %575 = vmatpush1.bf16.msra.mxu0 0
        %576 = vmatprep.subr.bf16.mxu0 0
        %577 = vmatpush1.bf16.msra.mxu0 0
        %578 = vmatprep.subr.bf16.mxu0 0
        %579 = vmatpush1.bf16.msra.mxu0 0
        %580 = vmatprep.subr.bf16.mxu0 0
        %581 = vmatpush1.bf16.msra.mxu0 0
        %582 = vmatprep.subr.bf16.mxu0 0
        %583 = vmatpush1.bf16.msra.mxu0 0
        %584 = vmatprep.subr.bf16.mxu0 0
        %585 = vmatpush1.bf16.msra.mxu0 0
        %586 = vmatprep.subr.bf16.mxu0 0
        %587 = vmatpush1.bf16.msra.mxu0 0
        %588 = vmatprep.subr.bf16.mxu0 0
        %589 = vmatpush1.bf16.msra.mxu0 0
        %590 = vmatprep.subr.bf16.mxu0 0
        %591 = vmatpush1.bf16.msra.mxu0 0
        %592 = vmatprep.subr.bf16.mxu0 0
        %593 = vmatpush1.bf16.msra.mxu0 0
        %594 = vmatprep.subr.bf16.mxu0 0
        %595 = vmatpush1.bf16.msra.mxu0 0
        %596 = vmatprep.subr.bf16.mxu0 0
        %597 = vmatpush1.bf16.msra.mxu0 0
        %598 = vmatprep.subr.bf16.mxu0 0
        %599 = vmatpush1.bf16.msra.mxu0 0
        %600 = vmatprep.mubr.bf16.mxu0 0
        %601 = vmatmul.mubr.bf16.gmra.mrb[0].mxu0 %v566
        %v602 = vpop.f32.mrb[0].mxu0
        %v603 = vadd.f32 0.0, %v602
        %v604 = vpop.f32.mrb[0].mxu0
        %v605 = vpop.f32.mrb[0].mxu0
        %v606 = vpop.f32.mrb[0].mxu0
        %607 = vdwg.mxu0
        %v608 = vmul.f32 %v501, 0.35355338
        %v609 = vld [vmem:[%s452] sm:$0xff]
        %v610 = vlaneseq
        %v611 = vand.u32 %v610, 127
        %612 = vset.pattern.permute.xlu0 0
        %613 = vperm.xlu0 %612, %v609
        %v614 = vpop.permute.xlu0 %613
        %vm615 = vcmp.lt.s32.totalorder %v611, %v614
        %v616 = vpack.c.bf16 %v608, %v608
        %v617 = vpack.c.bf16 %v552, %v552
        %v618 = vpack.c.bf16 %v603, %v603
        %vm619 = vcmask 64512
        %v621 = vsel %vm619, %v616, 0
        %v624 = vsel %vm619, %v617, 0
        %626 = vmatprep.subr.bf16.mxu0 0
        %627 = vmatpush1.bf16.xpose.msra.mxu0 %v624
        %628 = vmatprep.subr.bf16.mxu0 0
        %629 = vmatpush1.bf16.xpose.msra.mxu0 0
        %630 = vmatprep.subr.bf16.mxu0 0
        %631 = vmatpush1.bf16.xpose.msra.mxu0 0
        %632 = vmatprep.subr.bf16.mxu0 0
        %633 = vmatpush1.bf16.xpose.msra.mxu0 0
        %634 = vmatprep.subr.bf16.mxu0 0
        %635 = vmatpush1.bf16.xpose.msra.mxu0 0
        %636 = vmatprep.subr.bf16.mxu0 0
        %637 = vmatpush1.bf16.xpose.msra.mxu0 0
        %638 = vmatprep.subr.bf16.mxu0 0
        %639 = vmatpush1.bf16.xpose.msra.mxu0 0
        %640 = vmatprep.subr.bf16.mxu0 0
        %641 = vmatpush1.bf16.xpose.msra.mxu0 0
        %642 = vmatprep.subr.bf16.mxu0 0
        %643 = vmatpush1.bf16.xpose.msra.mxu0 0
        %644 = vmatprep.subr.bf16.mxu0 0
        %645 = vmatpush1.bf16.xpose.msra.mxu0 0
        %646 = vmatprep.subr.bf16.mxu0 0
        %647 = vmatpush1.bf16.xpose.msra.mxu0 0
        %648 = vmatprep.subr.bf16.mxu0 0
        %649 = vmatpush1.bf16.xpose.msra.mxu0 0
        %650 = vmatprep.subr.bf16.mxu0 0
        %651 = vmatpush1.bf16.xpose.msra.mxu0 0
        %652 = vmatprep.subr.bf16.mxu0 0
        %653 = vmatpush1.bf16.xpose.msra.mxu0 0
        %654 = vmatprep.subr.bf16.mxu0 0
        %655 = vmatpush1.bf16.xpose.msra.mxu0 0
        %656 = vmatprep.subr.bf16.mxu0 0
        %657 = vmatpush1.bf16.xpose.msra.mxu0 0
        %658 = vmatprep.mubr.bf16.mxu0 0
        %659 = vmatmul.mubr.bf16.gmra.mrb[0].mxu0 %v621
        %v660 = vpop.f32.mrb[0].mxu0
        %v661 = vadd.f32 0.0, %v660
        %v662 = vpop.f32.mrb[0].mxu0
        %v663 = vpop.f32.mrb[0].mxu0
        %v664 = vpop.f32.mrb[0].mxu0
        %665 = vdwg.mxu0
        %v666 = vsel %vm615, %v661, -1000000.0
        %v667 = vsel %vm619, %v666, -inf
        %668 = vmax.xlane.f32.xlu0 %v667
        %v669 = vpop.xlane.xlu0 %668
        %v670 = vsub.f32 %v666, %v669
        %v671 = vmul.f32 %v670, 1.442695
        %v672 = vpow.pop %v671
        %v673 = vsel %vm619, %v672, 0.0
        %674 = vadd.xlane.f32.xlu0 %v673
        %v675 = vpop.xlane.xlu0 %674
        %v676 = vrcp.pop %v675
        %v677 = vmul.f32 %v675, %v676
        %v678 = vsub.f32 2.0, %v677
        %v679 = vmul.f32 %v676, %v678
        %v680 = vmul.f32 %v672, %v679
        %v681 = vpack.c.bf16 %v680, %v680
        %v683 = vsel %vm619, %v681, 0
        %vm685 = vcmask 1043456
        %v687 = vsel %vm685, %v618, 0
        %689 = vmatprep.subr.bf16.mxu0 0
        %690 = vmatpush1.bf16.msra.mxu0 %v687
        %691 = vmatprep.subr.bf16.mxu0 0
        %692 = vmatpush1.bf16.msra.mxu0 0
        %693 = vmatprep.subr.bf16.mxu0 0
        %694 = vmatpush1.bf16.msra.mxu0 0
        %695 = vmatprep.subr.bf16.mxu0 0
        %696 = vmatpush1.bf16.msra.mxu0 0
        %697 = vmatprep.subr.bf16.mxu0 0
        %698 = vmatpush1.bf16.msra.mxu0 0
        %699 = vmatprep.subr.bf16.mxu0 0
        %700 = vmatpush1.bf16.msra.mxu0 0
        %701 = vmatprep.subr.bf16.mxu0 0
        %702 = vmatpush1.bf16.msra.mxu0 0
        %703 = vmatprep.subr.bf16.mxu0 0
        %704 = vmatpush1.bf16.msra.mxu0 0
        %705 = vmatprep.subr.bf16.mxu0 0
        %706 = vmatpush1.bf16.msra.mxu0 0
        %707 = vmatprep.subr.bf16.mxu0 0
        %708 = vmatpush1.bf16.msra.mxu0 0
        %709 = vmatprep.subr.bf16.mxu0 0
        %710 = vmatpush1.bf16.msra.mxu0 0
        %711 = vmatprep.subr.bf16.mxu0 0
        %712 = vmatpush1.bf16.msra.mxu0 0
        %713 = vmatprep.subr.bf16.mxu0 0
        %714 = vmatpush1.bf16.msra.mxu0 0
        %715 = vmatprep.subr.bf16.mxu0 0
        %716 = vmatpush1.bf16.msra.mxu0 0
        %717 = vmatprep.subr.bf16.mxu0 0
        %718 = vmatpush1.bf16.msra.mxu0 0
        %719 = vmatprep.subr.bf16.mxu0 0
        %720 = vmatpush1.bf16.msra.mxu0 0
        %721 = vmatprep.mubr.bf16.mxu0 0
        %722 = vmatmul.mubr.bf16.gmra.mrb[0].mxu0 %v683
        %v723 = vpop.f32.mrb[0].mxu0
        %v724 = vadd.f32 0.0, %v723
        %v725 = vpop.f32.mrb[0].mxu0
        %v726 = vpop.f32.mrb[0].mxu0
        %v727 = vpop.f32.mrb[0].mxu0
        %728 = vdwg.mxu0
        %729 = vst.msk [vmem:[#allocation2] sm:$0xff] %vm619, %v724
        %731 = vrot.lane.b32.xlu0 %v616, 120
        %v732 = vpop.permute.xlu0 %731
        %734 = vrot.lane.b32.xlu0 %v617, 120
        %v735 = vpop.permute.xlu0 %734
        %v737 = vsel %vm619, %v732, 0
        %v740 = vsel %vm619, %v735, 0
        %742 = vmatprep.subr.bf16.mxu0 0
        %743 = vmatpush1.bf16.xpose.msra.mxu0 %v740
        %744 = vmatprep.subr.bf16.mxu0 0
        %745 = vmatpush1.bf16.xpose.msra.mxu0 0
        %746 = vmatprep.subr.bf16.mxu0 0
        %747 = vmatpush1.bf16.xpose.msra.mxu0 0
        %748 = vmatprep.subr.bf16.mxu0 0
        %749 = vmatpush1.bf16.xpose.msra.mxu0 0
        %750 = vmatprep.subr.bf16.mxu0 0
        %751 = vmatpush1.bf16.xpose.msra.mxu0 0
        %752 = vmatprep.subr.bf16.mxu0 0
        %753 = vmatpush1.bf16.xpose.msra.mxu0 0
        %754 = vmatprep.subr.bf16.mxu0 0
        %755 = vmatpush1.bf16.xpose.msra.mxu0 0
        %756 = vmatprep.subr.bf16.mxu0 0
        %757 = vmatpush1.bf16.xpose.msra.mxu0 0
        %758 = vmatprep.subr.bf16.mxu0 0
        %759 = vmatpush1.bf16.xpose.msra.mxu0 0
        %760 = vmatprep.subr.bf16.mxu0 0
        %761 = vmatpush1.bf16.xpose.msra.mxu0 0
        %762 = vmatprep.subr.bf16.mxu0 0
        %763 = vmatpush1.bf16.xpose.msra.mxu0 0
        %764 = vmatprep.subr.bf16.mxu0 0
        %765 = vmatpush1.bf16.xpose.msra.mxu0 0
        %766 = vmatprep.subr.bf16.mxu0 0
        %767 = vmatpush1.bf16.xpose.msra.mxu0 0
        %768 = vmatprep.subr.bf16.mxu0 0
        %769 = vmatpush1.bf16.xpose.msra.mxu0 0
        %770 = vmatprep.subr.bf16.mxu0 0
        %771 = vmatpush1.bf16.xpose.msra.mxu0 0
        %772 = vmatprep.subr.bf16.mxu0 0
        %773 = vmatpush1.bf16.xpose.msra.mxu0 0
        %774 = vmatprep.mubr.bf16.mxu0 0
        %775 = vmatmul.mubr.bf16.gmra.mrb[0].mxu0 %v737
        %v776 = vpop.f32.mrb[0].mxu0
        %v777 = vadd.f32 0.0, %v776
        %v778 = vpop.f32.mrb[0].mxu0
        %v779 = vpop.f32.mrb[0].mxu0
        %v780 = vpop.f32.mrb[0].mxu0
        %781 = vdwg.mxu0
        %v782 = vsel %vm615, %v777, -1000000.0
        %v783 = vsel %vm619, %v782, -inf
        %784 = vmax.xlane.f32.xlu0 %v783
        %v785 = vpop.xlane.xlu0 %784
        %v786 = vsub.f32 %v782, %v785
        %v787 = vmul.f32 %v786, 1.442695
        %v788 = vpow.pop %v787
        %v789 = vsel %vm619, %v788, 0.0
        %790 = vadd.xlane.f32.xlu0 %v789
        %v791 = vpop.xlane.xlu0 %790
        %v792 = vrcp.pop %v791
        %v793 = vmul.f32 %v791, %v792
        %v794 = vsub.f32 2.0, %v793
        %v795 = vmul.f32 %v792, %v794
        %v796 = vmul.f32 %v788, %v795
        %v797 = vpack.c.bf16 %v796, %v796
        %799 = vrot.lane.b32.xlu0 %v618, 120
        %v800 = vpop.permute.xlu0 %799
        %v802 = vsel %vm619, %v797, 0
        %v805 = vsel %vm685, %v800, 0
        %807 = vmatprep.subr.bf16.mxu0 0
        %808 = vmatpush1.bf16.msra.mxu0 %v805
        %809 = vmatprep.subr.bf16.mxu0 0
        %810 = vmatpush1.bf16.msra.mxu0 0
        %811 = vmatprep.subr.bf16.mxu0 0
        %812 = vmatpush1.bf16.msra.mxu0 0
        %813 = vmatprep.subr.bf16.mxu0 0
        %814 = vmatpush1.bf16.msra.mxu0 0
        %815 = vmatprep.subr.bf16.mxu0 0
        %816 = vmatpush1.bf16.msra.mxu0 0
        %817 = vmatprep.subr.bf16.mxu0 0
        %818 = vmatpush1.bf16.msra.mxu0 0
        %819 = vmatprep.subr.bf16.mxu0 0
        %820 = vmatpush1.bf16.msra.mxu0 0
        %821 = vmatprep.subr.bf16.mxu0 0
        %822 = vmatpush1.bf16.msra.mxu0 0
        %823 = vmatprep.subr.bf16.mxu0 0
        %824 = vmatpush1.bf16.msra.mxu0 0
        %825 = vmatprep.subr.bf16.mxu0 0
        %826 = vmatpush1.bf16.msra.mxu0 0
        %827 = vmatprep.subr.bf16.mxu0 0
        %828 = vmatpush1.bf16.msra.mxu0 0
        %829 = vmatprep.subr.bf16.mxu0 0
        %830 = vmatpush1.bf16.msra.mxu0 0
        %831 = vmatprep.subr.bf16.mxu0 0
        %832 = vmatpush1.bf16.msra.mxu0 0
        %833 = vmatprep.subr.bf16.mxu0 0
        %834 = vmatpush1.bf16.msra.mxu0 0
        %835 = vmatprep.subr.bf16.mxu0 0
        %836 = vmatpush1.bf16.msra.mxu0 0
        %837 = vmatprep.subr.bf16.mxu0 0
        %838 = vmatpush1.bf16.msra.mxu0 0
        %839 = vmatprep.mubr.bf16.mxu0 0
        %840 = vmatmul.mubr.bf16.gmra.mrb[0].mxu0 %v802
        %v841 = vpop.f32.mrb[0].mxu0
        %v842 = vadd.f32 0.0, %v841
        %v843 = vpop.f32.mrb[0].mxu0
        %v844 = vpop.f32.mrb[0].mxu0
        %v845 = vpop.f32.mrb[0].mxu0
        %846 = vdwg.mxu0
        %848 = vrot.lane.b32.xlu0 %v842, 8
        %v849 = vpop.permute.xlu0 %848
        %vm851 = vcmask 130112
        %852 = vst.msk [vmem:[#allocation2] sm:$0xff] %vm851, %v849
        %853 = vrot.lane.b32.xlu0 %v616, 112
        %v854 = vpop.permute.xlu0 %853
        %855 = vrot.lane.b32.xlu0 %v617, 112
        %v856 = vpop.permute.xlu0 %855
        %v858 = vsel %vm619, %v854, 0
        %v861 = vsel %vm619, %v856, 0
        %863 = vmatprep.subr.bf16.mxu0 0
        %864 = vmatpush1.bf16.xpose.msra.mxu0 %v861
        %865 = vmatprep.subr.bf16.mxu0 0
        %866 = vmatpush1.bf16.xpose.msra.mxu0 0
        %867 = vmatprep.subr.bf16.mxu0 0
        %868 = vmatpush1.bf16.xpose.msra.mxu0 0
        %869 = vmatprep.subr.bf16.mxu0 0
        %870 = vmatpush1.bf16.xpose.msra.mxu0 0
        %871 = vmatprep.subr.bf16.mxu0 0
        %872 = vmatpush1.bf16.xpose.msra.mxu0 0
        %873 = vmatprep.subr.bf16.mxu0 0
        %874 = vmatpush1.bf16.xpose.msra.mxu0 0
        %875 = vmatprep.subr.bf16.mxu0 0
        %876 = vmatpush1.bf16.xpose.msra.mxu0 0
        %877 = vmatprep.subr.bf16.mxu0 0
        %878 = vmatpush1.bf16.xpose.msra.mxu0 0
        %879 = vmatprep.subr.bf16.mxu0 0
        %880 = vmatpush1.bf16.xpose.msra.mxu0 0
        %881 = vmatprep.subr.bf16.mxu0 0
        %882 = vmatpush1.bf16.xpose.msra.mxu0 0
        %883 = vmatprep.subr.bf16.mxu0 0
        %884 = vmatpush1.bf16.xpose.msra.mxu0 0
        %885 = vmatprep.subr.bf16.mxu0 0
        %886 = vmatpush1.bf16.xpose.msra.mxu0 0
        %887 = vmatprep.subr.bf16.mxu0 0
        %888 = vmatpush1.bf16.xpose.msra.mxu0 0
        %889 = vmatprep.subr.bf16.mxu0 0
        %890 = vmatpush1.bf16.xpose.msra.mxu0 0
        %891 = vmatprep.subr.bf16.mxu0 0
        %892 = vmatpush1.bf16.xpose.msra.mxu0 0
        %893 = vmatprep.subr.bf16.mxu0 0
        %894 = vmatpush1.bf16.xpose.msra.mxu0 0
        %895 = vmatprep.mubr.bf16.mxu0 0
        %896 = vmatmul.mubr.bf16.gmra.mrb[0].mxu0 %v858
        %v897 = vpop.f32.mrb[0].mxu0
        %v898 = vadd.f32 0.0, %v897
        %v899 = vpop.f32.mrb[0].mxu0
        %v900 = vpop.f32.mrb[0].mxu0
        %v901 = vpop.f32.mrb[0].mxu0
        %902 = vdwg.mxu0
        %v903 = vsel %vm615, %v898, -1000000.0
        %v904 = vsel %vm619, %v903, -inf
        %905 = vmax.xlane.f32.xlu0 %v904
        %v906 = vpop.xlane.xlu0 %905
        %v907 = vsub.f32 %v903, %v906
        %v908 = vmul.f32 %v907, 1.442695
        %v909 = vpow.pop %v908
        %v910 = vsel %vm619, %v909, 0.0
        %911 = vadd.xlane.f32.xlu0 %v910
        %v912 = vpop.xlane.xlu0 %911
        %v913 = vrcp.pop %v912
        %v914 = vmul.f32 %v912, %v913
        %v915 = vsub.f32 2.0, %v914
        %v916 = vmul.f32 %v913, %v915
        %v917 = vmul.f32 %v909, %v916
        %v918 = vpack.c.bf16 %v917, %v917
        %919 = vrot.lane.b32.xlu0 %v618, 112
        %v920 = vpop.permute.xlu0 %919
        %v922 = vsel %vm619, %v918, 0
        %v925 = vsel %vm685, %v920, 0
        %927 = vmatprep.subr.bf16.mxu0 0
        %928 = vmatpush1.bf16.msra.mxu0 %v925
        %929 = vmatprep.subr.bf16.mxu0 0
        %930 = vmatpush1.bf16.msra.mxu0 0
        %931 = vmatprep.subr.bf16.mxu0 0
        %932 = vmatpush1.bf16.msra.mxu0 0
        %933 = vmatprep.subr.bf16.mxu0 0
        %934 = vmatpush1.bf16.msra.mxu0 0
        %935 = vmatprep.subr.bf16.mxu0 0
        %936 = vmatpush1.bf16.msra.mxu0 0
        %937 = vmatprep.subr.bf16.mxu0 0
        %938 = vmatpush1.bf16.msra.mxu0 0
        %939 = vmatprep.subr.bf16.mxu0 0
        %940 = vmatpush1.bf16.msra.mxu0 0
        %941 = vmatprep.subr.bf16.mxu0 0
        %942 = vmatpush1.bf16.msra.mxu0 0
        %943 = vmatprep.subr.bf16.mxu0 0
        %944 = vmatpush1.bf16.msra.mxu0 0
        %945 = vmatprep.subr.bf16.mxu0 0
        %946 = vmatpush1.bf16.msra.mxu0 0
        %947 = vmatprep.subr.bf16.mxu0 0
        %948 = vmatpush1.bf16.msra.mxu0 0
        %949 = vmatprep.subr.bf16.mxu0 0
        %950 = vmatpush1.bf16.msra.mxu0 0
        %951 = vmatprep.subr.bf16.mxu0 0
        %952 = vmatpush1.bf16.msra.mxu0 0
        %953 = vmatprep.subr.bf16.mxu0 0
        %954 = vmatpush1.bf16.msra.mxu0 0
        %955 = vmatprep.subr.bf16.mxu0 0
        %956 = vmatpush1.bf16.msra.mxu0 0
        %957 = vmatprep.subr.bf16.mxu0 0
        %958 = vmatpush1.bf16.msra.mxu0 0
        %959 = vmatprep.mubr.bf16.mxu0 0
        %960 = vmatmul.mubr.bf16.gmra.mrb[0].mxu0 %v922
        %v961 = vpop.f32.mrb[0].mxu0
        %v962 = vadd.f32 0.0, %v961
        %v963 = vpop.f32.mrb[0].mxu0
        %v964 = vpop.f32.mrb[0].mxu0
        %v965 = vpop.f32.mrb[0].mxu0
        %966 = vdwg.mxu0
        %968 = vrot.lane.b32.xlu0 %v962, 16
        %v969 = vpop.permute.xlu0 %968
        %vm971 = vcmask 195712
        %972 = vst.msk [vmem:[#allocation2] sm:$0xff] %vm971, %v969
        %973 = vrot.lane.b32.xlu0 %v616, 104
        %v974 = vpop.permute.xlu0 %973
        %975 = vrot.lane.b32.xlu0 %v617, 104
        %v976 = vpop.permute.xlu0 %975
        %v978 = vsel %vm619, %v974, 0
        %v981 = vsel %vm619, %v976, 0
        %983 = vmatprep.subr.bf16.mxu0 0
        %984 = vmatpush1.bf16.xpose.msra.mxu0 %v981
        %985 = vmatprep.subr.bf16.mxu0 0
        %986 = vmatpush1.bf16.xpose.msra.mxu0 0
        %987 = vmatprep.subr.bf16.mxu0 0
        %988 = vmatpush1.bf16.xpose.msra.mxu0 0
        %989 = vmatprep.subr.bf16.mxu0 0
        %990 = vmatpush1.bf16.xpose.msra.mxu0 0
        %991 = vmatprep.subr.bf16.mxu0 0
        %992 = vmatpush1.bf16.xpose.msra.mxu0 0
        %993 = vmatprep.subr.bf16.mxu0 0
        %994 = vmatpush1.bf16.xpose.msra.mxu0 0
        %995 = vmatprep.subr.bf16.mxu0 0
        %996 = vmatpush1.bf16.xpose.msra.mxu0 0
        %997 = vmatprep.subr.bf16.mxu0 0
        %998 = vmatpush1.bf16.xpose.msra.mxu0 0
        %999 = vmatprep.subr.bf16.mxu0 0
        %1000 = vmatpush1.bf16.xpose.msra.mxu0 0
        %1001 = vmatprep.subr.bf16.mxu0 0
        %1002 = vmatpush1.bf16.xpose.msra.mxu0 0
        %1003 = vmatprep.subr.bf16.mxu0 0
        %1004 = vmatpush1.bf16.xpose.msra.mxu0 0
        %1005 = vmatprep.subr.bf16.mxu0 0
        %1006 = vmatpush1.bf16.xpose.msra.mxu0 0
        %1007 = vmatprep.subr.bf16.mxu0 0
        %1008 = vmatpush1.bf16.xpose.msra.mxu0 0
        %1009 = vmatprep.subr.bf16.mxu0 0
        %1010 = vmatpush1.bf16.xpose.msra.mxu0 0
        %1011 = vmatprep.subr.bf16.mxu0 0
        %1012 = vmatpush1.bf16.xpose.msra.mxu0 0
        %1013 = vmatprep.subr.bf16.mxu0 0
        %1014 = vmatpush1.bf16.xpose.msra.mxu0 0
        %1015 = vmatprep.mubr.bf16.mxu0 0
        %1016 = vmatmul.mubr.bf16.gmra.mrb[0].mxu0 %v978
        %v1017 = vpop.f32.mrb[0].mxu0
        %v1018 = vadd.f32 0.0, %v1017
        %v1019 = vpop.f32.mrb[0].mxu0
        %v1020 = vpop.f32.mrb[0].mxu0
        %v1021 = vpop.f32.mrb[0].mxu0
        %1022 = vdwg.mxu0
        %v1023 = vsel %vm615, %v1018, -1000000.0
        %v1024 = vsel %vm619, %v1023, -inf
        %1025 = vmax.xlane.f32.xlu0 %v1024
        %v1026 = vpop.xlane.xlu0 %1025
        %v1027 = vsub.f32 %v1023, %v1026
        %v1028 = vmul.f32 %v1027, 1.442695
        %v1029 = vpow.pop %v1028
        %v1030 = vsel %vm619, %v1029, 0.0
        %1031 = vadd.xlane.f32.xlu0 %v1030
        %v1032 = vpop.xlane.xlu0 %1031
        %v1033 = vrcp.pop %v1032
        %v1034 = vmul.f32 %v1032, %v1033
        %v1035 = vsub.f32 2.0, %v1034
        %v1036 = vmul.f32 %v1033, %v1035
        %v1037 = vmul.f32 %v1029, %v1036
        %v1038 = vpack.c.bf16 %v1037, %v1037
        %1039 = vrot.lane.b32.xlu0 %v618, 104
        %v1040 = vpop.permute.xlu0 %1039
        %v1042 = vsel %vm619, %v1038, 0
        %v1045 = vsel %vm685, %v1040, 0
        %1047 = vmatprep.subr.bf16.mxu0 0
        %1048 = vmatpush1.bf16.msra.mxu0 %v1045
        %1049 = vmatprep.subr.bf16.mxu0 0
        %1050 = vmatpush1.bf16.msra.mxu0 0
        %1051 = vmatprep.subr.bf16.mxu0 0
        %1052 = vmatpush1.bf16.msra.mxu0 0
        %1053 = vmatprep.subr.bf16.mxu0 0
        %1054 = vmatpush1.bf16.msra.mxu0 0
        %1055 = vmatprep.subr.bf16.mxu0 0
        %1056 = vmatpush1.bf16.msra.mxu0 0
        %1057 = vmatprep.subr.bf16.mxu0 0
        %1058 = vmatpush1.bf16.msra.mxu0 0
        %1059 = vmatprep.subr.bf16.mxu0 0
        %1060 = vmatpush1.bf16.msra.mxu0 0
        %1061 = vmatprep.subr.bf16.mxu0 0
        %1062 = vmatpush1.bf16.msra.mxu0 0
        %1063 = vmatprep.subr.bf16.mxu0 0
        %1064 = vmatpush1.bf16.msra.mxu0 0
        %1065 = vmatprep.subr.bf16.mxu0 0
        %1066 = vmatpush1.bf16.msra.mxu0 0
        %1067 = vmatprep.subr.bf16.mxu0 0
        %1068 = vmatpush1.bf16.msra.mxu0 0
        %1069 = vmatprep.subr.bf16.mxu0 0
        %1070 = vmatpush1.bf16.msra.mxu0 0
        %1071 = vmatprep.subr.bf16.mxu0 0
        %1072 = vmatpush1.bf16.msra.mxu0 0
        %1073 = vmatprep.subr.bf16.mxu0 0
        %1074 = vmatpush1.bf16.msra.mxu0 0
        %1075 = vmatprep.subr.bf16.mxu0 0
        %1076 = vmatpush1.bf16.msra.mxu0 0
        %1077 = vmatprep.subr.bf16.mxu0 0
        %1078 = vmatpush1.bf16.msra.mxu0 0
        %1079 = vmatprep.mubr.bf16.mxu0 0
        %1080 = vmatmul.mubr.bf16.gmra.mrb[0].mxu0 %v1042
        %v1081 = vpop.f32.mrb[0].mxu0
        %v1082 = vadd.f32 0.0, %v1081
        %v1083 = vpop.f32.mrb[0].mxu0
        %v1084 = vpop.f32.mrb[0].mxu0
        %v1085 = vpop.f32.mrb[0].mxu0
        %1086 = vdwg.mxu0
        %1088 = vrot.lane.b32.xlu0 %v1082, 24
        %v1089 = vpop.permute.xlu0 %1088
        %vm1091 = vcmask 261312
        %1092 = vst.msk [vmem:[#allocation2] sm:$0xff] %vm1091, %v1089
        %v1093 = vld [vmem:[#allocation2] sm:$0xff]
        %v1094 = vpack.c.bf16 %v1093, %v1093
        %v1095 = vld [vmem:[#allocation12] sm:$0xff]
        %v1096 = vld [vmem:[#allocation12 + $0x8] sm:$0xff]
        %v1097 = vld [vmem:[#allocation12 + $0x10] sm:$0xff]
        %v1098 = vld [vmem:[#allocation12 + $0x18] sm:$0xff]
        %v1099 = vpack.c.bf16 %v1096, %v1095
        %v1100 = vpack.c.bf16 %v1098, %v1097
        %v1102 = vsel %vm462, %v1094, 0
        %1104 = vmatprep.subr.bf16.mxu0 0
        %1105 = vmatpush1.bf16.msra.mxu0 %v1099
        %1106 = vmatprep.subr.bf16.mxu0 0
        %1107 = vmatpush1.bf16.msra.mxu0 %v1100
        %1108 = vmatprep.subr.bf16.mxu0 0
        %1109 = vmatpush1.bf16.msra.mxu0 0
        %1110 = vmatprep.subr.bf16.mxu0 0
        %1111 = vmatpush1.bf16.msra.mxu0 0
        %1112 = vmatprep.subr.bf16.mxu0 0
        %1113 = vmatpush1.bf16.msra.mxu0 0
        %1114 = vmatprep.subr.bf16.mxu0 0
        %1115 = vmatpush1.bf16.msra.mxu0 0
        %1116 = vmatprep.subr.bf16.mxu0 0
        %1117 = vmatpush1.bf16.msra.mxu0 0
        %1118 = vmatprep.subr.bf16.mxu0 0
        %1119 = vmatpush1.bf16.msra.mxu0 0
        %1120 = vmatprep.subr.bf16.mxu0 0
        %1121 = vmatpush1.bf16.msra.mxu0 0
        %1122 = vmatprep.subr.bf16.mxu0 0
        %1123 = vmatpush1.bf16.msra.mxu0 0
        %1124 = vmatprep.subr.bf16.mxu0 0
        %1125 = vmatpush1.bf16.msra.mxu0 0
        %1126 = vmatprep.subr.bf16.mxu0 0
        %1127 = vmatpush1.bf16.msra.mxu0 0
        %1128 = vmatprep.subr.bf16.mxu0 0
        %1129 = vmatpush1.bf16.msra.mxu0 0
        %1130 = vmatprep.subr.bf16.mxu0 0
        %1131 = vmatpush1.bf16.msra.mxu0 0
        %1132 = vmatprep.subr.bf16.mxu0 0
        %1133 = vmatpush1.bf16.msra.mxu0 0
        %1134 = vmatprep.subr.bf16.mxu0 0
        %1135 = vmatpush1.bf16.msra.mxu0 0
        %1136 = vmatprep.mubr.bf16.mxu0 0
        %1137 = vmatmul.mubr.bf16.gmra.mrb[0].mxu0 %v1102
        %v1138 = vpop.f32.mrb[0].mxu0
        %v1139 = vadd.f32 0.0, %v1138
        %v1140 = vpop.f32.mrb[0].mxu0
        %v1141 = vpop.f32.mrb[0].mxu0
        %v1142 = vpop.f32.mrb[0].mxu0
        %1143 = vdwg.mxu0
        %1144 = vst.msk [vmem:[%s448] sm:$0xff] %vm462, %v1139
        %s1145 = sand.u32 %s226, 1
        %s1146 = scalar_lea.sflag [#allocation5], %s1145
        %s1147 = sand.u32 %s226, 1
        %s1148 = smul.addr %s1147, 8
        %s1149 = scalar_lea.vmem [#allocation14], %s1148
        // Predicated region
        $region77: #{tpu_custom_call.1} parent=51 // pred_check
          %p1150 = pneg %p236
        $region78: #{tpu_custom_call.1} parent=51 // pred_check_branch
          %1152 = sbr.rel (%p1150) target = $region80
        $region79: #{tpu_custom_call.1} parent=51 // pred_region
          %s1154 = ssub.s32 128, 128
          %1155 = vsyncadd %s1146, %s1154
          %s1156 = smul.addr %s30, 128
          %s1157 = scalar_lea.hbm %s8, %s1156
          %s1159 = sshll.u32 %s1149, 4
          %s1160 = int_to_ptr.vmem [resolvable:$true] %s1159
          %1162 = dma.vmem_to_hbm [thread:$0]  %s1160, 128, %s1157, %s1146
        $region80: #{tpu_custom_call.1} parent=51 // pred_fallthru
          _
      $region52: #{tpu_custom_call.1} parent=5 // pred_fallthru
        _
      %p1163 = scmp.le.s32.totalorder 2, %s25
      // Predicated region
      $region81: #{tpu_custom_call.1} parent=5 // pred_check
        %p1164 = pneg %p1163
      $region82: #{tpu_custom_call.1} parent=5 // pred_check_branch
        %1166 = sbr.rel (%p1164) target = $region84
      $region83: #{tpu_custom_call.1} parent=5 // pred_region
        %s1167 = ssub.s32 %s25, 2
        // Predicated region
        $region85: #{tpu_custom_call.1} parent=83 // pred_check
          %p1168 = pneg %p242
        $region86: #{tpu_custom_call.1} parent=83 // pred_check_branch
          %1170 = sbr.rel (%p1168) target = $region88
        $region87: #{tpu_custom_call.1} parent=83 // pred_region
          %s1171 = sand.u32 %s227, 1
          %s1172 = scalar_lea.sflag [#allocation5], %s1171
          %s1173 = sand.u32 %s227, 1
          %s1174 = smul.addr %s1173, 8
          %s1175 = scalar_lea.vmem [#allocation14], %s1174
          %1176 = dma.done %s1172, 128
        $region88: #{tpu_custom_call.1} parent=83 // pred_fallthru
          _
      $region84: #{tpu_custom_call.1} parent=5 // pred_fallthru
        _
    $region6: #{tpu_custom_call.1} parent=1 // loop_footer
      %s29 = sadd.s32 1, %s25
    $region7: #{tpu_custom_call.1} parent=1 // loop_footer_branch
      %24 = sbr.rel target = $region3
    $region8: #{tpu_custom_call.1} parent=1 // loop_exit
      _
    %1177 = vsyncpa [#allocation4], 1
    %s1178 = scalar_lea.sflag [#allocation4], 1
    %1179 = vsyncpa %s1178, 1
    %1180 = vsyncpa [#allocation7], 1
    %s1181 = scalar_lea.sflag [#allocation7], 1
    %1182 = vsyncpa %s1181, 1
    %1183 = vsyncpa [#allocation10], 1
    %1184 = vsyncpa [#allocation13], 1
    %1185 = vsyncpa [#allocation5], 1
    %s1186 = scalar_lea.sflag [#allocation5], 1
    %1187 = vsyncpa %s1186, 1

</llo_original>
